<compile_context>
chip_gen: v6e
topology: v6e:2x2x1
jax: 0.10.0
libtpu: 0.0.40
codegen_flags: <defaults>
</compile_context>

<pallas_src>
import functools
import math

import jax
import jax.numpy as jnp
from jax.experimental import pallas as pl
from jax.experimental.pallas import tpu as pltpu


def _round_up(x, m):
    return ((x + m - 1) // m) * m


def _fused_lora_mlp_kernel(x_ref, *refs, layer_dims, negative_slope):
    """refs = [w_a_T_0, bias_0, bT_0, ..., w_a_T_{L-1}, bias_{L-1}, bT_{L-1}, out].

    w_a_T_i : (in_i, out_p_i + r_p_i) bf16  -- concat of W^T (padded) and A^T (padded)
    bias_i  : (1, out_p_i) f32
    bT_i    : (r_p_i, out_p_i) bf16         -- (scale * B)^T, zero-padded
    """
    o_ref = refs[-1]
    p = refs[:-1]
    num_layers = len(layer_dims)
    h = x_ref[...].astype(jnp.bfloat16)                        # (TM, in) bf16
    for i, (out_p, r_p) in enumerate(layer_dims):
        w_a_T, bias, bT = p[3 * i: 3 * i + 3]
        # One MXU matmul covers the dense path AND the LoRA down-projection.
        ya = jnp.dot(h, w_a_T[...], preferred_element_type=jnp.float32)
        y = ya[:, :out_p]                                      # dense result
        xa = ya[:, out_p:out_p + r_p]                          # x @ A^T
        # LoRA up-projection: (x @ A^T) @ (scale * B^T); scale folded into bT.
        y = y + jnp.dot(xa.astype(jnp.bfloat16), bT[...],
                        preferred_element_type=jnp.float32)
        y = y + bias[...]                                      # f32 bias add
        if i < num_layers - 1:
            y = jnp.where(y >= 0, y, negative_slope * y)       # LeakyReLU (f32)
            h = y.astype(jnp.bfloat16)
        else:
            o_ref[...] = y.astype(o_ref.dtype)
    # Dropout(p=0.0) is the identity; nothing to do.


def prepare_lora_params(params, *, lora_alpha=1.0):
    """One-time re-layout of PyTorch-layout params into kernel-ready arrays.

    `params` is a list of (W(out,in), b(out,), lora_A(r,in), lora_B(out,r)).
    Returns a dict meant to be cached and reused across forward calls.
    """
    flat, layer_dims = [], []
    for (w, b, a, bb) in params:
        out_f, _ = w.shape
        r = a.shape[0]
        out_p = _round_up(out_f, 128)
        r_p = _round_up(r, 128)
        scale = lora_alpha / r
        wT = jnp.pad(w.T, ((0, 0), (0, out_p - out_f)))                      # (in, out_p)
        aT = jnp.pad(a.T, ((0, 0), (0, r_p - r)))                            # (in, r_p)
        w_a_T = jnp.concatenate([wT, aT], axis=1).astype(jnp.bfloat16)       # (in, out_p+r_p)
        bT = jnp.pad((scale * bb).T,
                     ((0, r_p - r), (0, out_p - out_f))).astype(jnp.bfloat16)  # (r_p, out_p)
        bias = jnp.pad(b, (0, out_p - out_f)).astype(jnp.float32).reshape(1, out_p)
        flat += [w_a_T, bias, bT]
        layer_dims.append((out_p, r_p))
    flat = [jax.block_until_ready(arr) for arr in flat]     # materialize once
    return dict(
        flat_params=flat,
        layer_dims=tuple(layer_dims),
        in_features=params[0][0].shape[1],
        num_classes=params[-1][0].shape[0],
    )


def lora_mlp_forward_prepared(x, prepared, *, block_m=128, negative_slope=0.01):
    flat_params = prepared["flat_params"]
    layer_dims = prepared["layer_dims"]
    num_classes = prepared["num_classes"]
    batch, in_f = x.shape
    assert in_f == prepared["in_features"]

    # bf16 LHS packs 16 rows per sublane tile -> round the batch tile to 16.
    tm = min(block_m, _round_up(batch, 16))
    # v7x has 2 TensorCores; give the "parallel" batch axis >= 2 steps when the
    # batch is big enough to split into >=16-row tiles.
    if batch >= 32:
        tm = min(tm, _round_up(-(-batch // 2), 16))
    batch_p = _round_up(batch, tm)
    if batch_p != batch:
        x = jnp.pad(x, ((0, batch_p - batch), (0, 0)))
    x = x.astype(jnp.float32)

    out_p_last = layer_dims[-1][0]
    grid = (batch_p // tm,)

    # Explicit VMEM budget: single-buffered resident weights, double-buffered
    # x/out tiles, f32 intermediates, plus headroom. Clamped to a range that is
    # safe on v5e/v6e (128 MiB) and v7x (64 MiB physical).
    weight_bytes = sum(int(a.size) * a.dtype.itemsize for a in flat_params)
    max_w = max(op + rp for (op, rp) in layer_dims)
    io_bytes = 2 * (tm * in_f * 4 + tm * out_p_last * 4)
    scratch_bytes = 6 * tm * max_w * 4
    vmem_limit = int(max(16 << 20,
                         min(48 << 20,
                             2 * (weight_bytes + io_bytes + scratch_bytes) + (4 << 20))))

    kernel = functools.partial(_fused_lora_mlp_kernel, layer_dims=layer_dims,
                               negative_slope=negative_slope)

    def _run(single_buffer_weights):
        def _resident_spec(shape):
            idx = lambda i: (0,) * len(shape)
            if single_buffer_weights:
                # Grid-invariant blocks: double buffering buys nothing.
                return pl.BlockSpec(shape, idx, pipeline_mode=pl.Buffered(1))
            return pl.BlockSpec(shape, idx)

        in_specs = [pl.BlockSpec((tm, in_f), lambda i: (i, 0))]
        for arr in flat_params:
            in_specs.append(_resident_spec(arr.shape))
        out_specs = pl.BlockSpec((tm, out_p_last), lambda i: (i, 0))

        return pl.pallas_call(
            kernel,
            out_shape=jax.ShapeDtypeStruct((batch_p, out_p_last), jnp.float32),
            grid=grid,
            in_specs=in_specs,
            out_specs=out_specs,
            compiler_params=pltpu.CompilerParams(
                dimension_semantics=("parallel",),
                vmem_limit_bytes=vmem_limit),
        )(x, *flat_params)

    try:
        out = _run(True)
    except Exception:
        # Fallback for JAX versions where pipeline_mode / Buffered(1) is not
        # supported for these specs; identical math, default double buffering.
        out = _run(False)
    return out[:batch, :num_classes]


def lora_mlp_forward(x, params, *, lora_alpha=1.0, block_m=128,
                     negative_slope=0.01):
    """Convenience wrapper: prepares params then calls the fused kernel.
    For repeated calls, cache prepare_lora_params() and use the *_prepared fn."""
    prepared = prepare_lora_params(params, lora_alpha=lora_alpha)
    return lora_mlp_forward_prepared(x, prepared, block_m=block_m,
                                     negative_slope=negative_slope)


def init_params(key, *, num_classes, input_size, hidden_size, hidden_layers,
                lora_rank):
    """Parameter init mirroring the module (PyTorch layout).

    Dense weights: kaiming_normal_(mode='fan_out', nonlinearity='leaky_relu'),
    bias = 0. LoRA A/B get small random values so the LoRA path is exercised
    (loralib inits B to zeros, which would make the path a no-op)."""
    gain = math.sqrt(2.0 / (1.0 + 0.01 ** 2))
    dims = [(input_size, hidden_size)]
    for _ in range(hidden_layers - 1):
        dims.append((hidden_size, hidden_size))
    dims.append((hidden_size, num_classes))      # classifier

    params = []
    for (fan_in, fan_out) in dims:
        key, kw, ka, kb = jax.random.split(key, 4)
        std = gain / math.sqrt(fan_out)
        w = std * jax.random.normal(kw, (fan_out, fan_in), jnp.float32)
        b = jnp.zeros((fan_out,), jnp.float32)
        a = 0.02 * jax.random.normal(ka, (lora_rank, fan_in), jnp.float32)
        bb = 0.02 * jax.random.normal(kb, (fan_out, lora_rank), jnp.float32)
        params.append((w, b, a, bb))
    return params


def _reference(x, params, *, lora_alpha=1.0, negative_slope=0.01):
    """Pure-JAX reference using the same bf16-operand / f32-accumulate math."""
    n = len(params)
    h = x
    for i, (w, b, a, bb) in enumerate(params):
        r = a.shape[0]
        scale = lora_alpha / r
        hb = h.astype(jnp.bfloat16)
        y = jnp.dot(hb, w.T.astype(jnp.bfloat16),
                    preferred_element_type=jnp.float32)
        xa = jnp.dot(hb, a.T.astype(jnp.bfloat16),
                     preferred_element_type=jnp.float32)
        y = y + jnp.dot(xa.astype(jnp.bfloat16),
                        (scale * bb).T.astype(jnp.bfloat16),
                        preferred_element_type=jnp.float32)
        y = y + b
        if i < n - 1:
            y = jnp.where(y >= 0, y, negative_slope * y)
        h = y
    return h


if __name__ == "__main__":
    # Small shapes consistent with the module structure.
    batch = 8
    num_classes = 8
    input_size = 256
    hidden_size = 128
    hidden_layers = 2
    lora_rank = 128          # module default; also keeps the LoRA dims lane-aligned

    key = jax.random.PRNGKey(0)
    kx, kp = jax.random.split(key)
    x = jax.random.normal(kx, (batch, input_size), jnp.float32)
    params = init_params(kp, num_classes=num_classes, input_size=input_size,
                         hidden_size=hidden_size, hidden_layers=hidden_layers,
                         lora_rank=lora_rank)

    # Prepare weights once (cached across forward calls), then run the kernel.
    prepared = prepare_lora_params(params, lora_alpha=1.0)
    out = lora_mlp_forward_prepared(x, prepared)
    jax.block_until_ready(out)
    assert out.shape == (batch, num_classes), out.shape

    ref = _reference(x, params, lora_alpha=1.0)
    assert jnp.all(jnp.isfinite(out))
    assert jnp.allclose(out, ref, rtol=5e-2, atol=5e-2), \
        float(jnp.max(jnp.abs(out - ref)))
    print("KERNEL_OK")
</pallas_src>

<mosaic_0001>
module attributes {stable_mosaic.version = 11 : i64} {
  func.func @_fused_lora_mlp_kernel(%arg0: i32, %arg1: memref<16x256xf32, #tpu.memory_space<vmem>>, %arg2: memref<256x256xbf16, #tpu.memory_space<vmem>>, %arg3: memref<1x128xf32, #tpu.memory_space<vmem>>, %arg4: memref<128x128xbf16, #tpu.memory_space<vmem>>, %arg5: memref<128x256xbf16, #tpu.memory_space<vmem>>, %arg6: memref<1x128xf32, #tpu.memory_space<vmem>>, %arg7: memref<128x128xbf16, #tpu.memory_space<vmem>>, %arg8: memref<128x256xbf16, #tpu.memory_space<vmem>>, %arg9: memref<1x128xf32, #tpu.memory_space<vmem>>, %arg10: memref<128x128xbf16, #tpu.memory_space<vmem>>, %arg11: memref<16x128xf32, #tpu.memory_space<vmem>>) attributes {dimension_semantics = [#tpu.dimension_semantics<parallel>], iteration_bounds = array<i64: 1>, scalar_prefetch = 0 : i64, scratch_operands = 0 : i64, tpu.core_type = #tpu.core_type<tc>, window_params = [{transform_indices = @transform_0, window_bounds = array<i64: 16, 256>}, {pipeline_mode = #tpu.pipeline_mode<synchronous>, transform_indices = @transform_1, window_bounds = array<i64: 256, 256>}, {pipeline_mode = #tpu.pipeline_mode<synchronous>, transform_indices = @transform_2, window_bounds = array<i64: 1, 128>}, {pipeline_mode = #tpu.pipeline_mode<synchronous>, transform_indices = @transform_3, window_bounds = array<i64: 128, 128>}, {pipeline_mode = #tpu.pipeline_mode<synchronous>, transform_indices = @transform_4, window_bounds = array<i64: 128, 256>}, {pipeline_mode = #tpu.pipeline_mode<synchronous>, transform_indices = @transform_5, window_bounds = array<i64: 1, 128>}, {pipeline_mode = #tpu.pipeline_mode<synchronous>, transform_indices = @transform_6, window_bounds = array<i64: 128, 128>}, {pipeline_mode = #tpu.pipeline_mode<synchronous>, transform_indices = @transform_7, window_bounds = array<i64: 128, 256>}, {pipeline_mode = #tpu.pipeline_mode<synchronous>, transform_indices = @transform_8, window_bounds = array<i64: 1, 128>}, {pipeline_mode = #tpu.pipeline_mode<synchronous>, transform_indices = @transform_9, window_bounds = array<i64: 128, 128>}, {transform_indices = @transform_10, window_bounds = array<i64: 16, 128>}]} {
    %c0 = arith.constant 0 : index
    %c0_0 = arith.constant 0 : index
    %0 = vector.load %arg1[%c0, %c0_0] : memref<16x256xf32, #tpu.memory_space<vmem>>, vector<16x256xf32>
    %1 = arith.truncf %0 : vector<16x256xf32> to vector<16x256xbf16>
    %c0_1 = arith.constant 0 : index
    %c0_2 = arith.constant 0 : index
    %2 = vector.load %arg2[%c0_1, %c0_2] : memref<256x256xbf16, #tpu.memory_space<vmem>>, vector<256x256xbf16>
    %cst = arith.constant dense<0.000000e+00> : vector<16x256xf32>
    %3 = tpu.matmul %1, %2, %cst {dimension_numbers = #tpu.dot_dimension_numbers<[1], [0], [0], [1], [0, 0, 1, 1], [], []>} : vector<16x256xbf16>, vector<256x256xbf16>, vector<16x256xf32> -> vector<16x256xf32>
    %4 = vector.extract_strided_slice %3 {offsets = [0, 0], sizes = [16, 128], strides = [1, 1]} : vector<16x256xf32> to vector<16x128xf32>
    %5 = vector.extract_strided_slice %3 {offsets = [0, 128], sizes = [16, 128], strides = [1, 1]} : vector<16x256xf32> to vector<16x128xf32>
    %6 = arith.truncf %5 : vector<16x128xf32> to vector<16x128xbf16>
    %c0_3 = arith.constant 0 : index
    %c0_4 = arith.constant 0 : index
    %7 = vector.load %arg4[%c0_3, %c0_4] : memref<128x128xbf16, #tpu.memory_space<vmem>>, vector<128x128xbf16>
    %cst_5 = arith.constant dense<0.000000e+00> : vector<16x128xf32>
    %8 = tpu.matmul %6, %7, %cst_5 {dimension_numbers = #tpu.dot_dimension_numbers<[1], [0], [0], [1], [0, 0, 1, 1], [], []>} : vector<16x128xbf16>, vector<128x128xbf16>, vector<16x128xf32> -> vector<16x128xf32>
    %9 = arith.addf %4, %8 : vector<16x128xf32>
    %c0_6 = arith.constant 0 : index
    %c0_7 = arith.constant 0 : index
    %10 = vector.load %arg3[%c0_6, %c0_7] : memref<1x128xf32, #tpu.memory_space<vmem>>, vector<1x128xf32>
    %11 = vector.broadcast %10 : vector<1x128xf32> to vector<16x128xf32>
    %12 = arith.addf %9, %11 : vector<16x128xf32>
    %cst_8 = arith.constant 0.000000e+00 : f32
    %13 = vector.broadcast %cst_8 : f32 to vector<16x128xf32>
    %14 = arith.cmpf oge, %12, %13 : vector<16x128xf32>
    %cst_9 = arith.constant 0.00999999977 : f32
    %15 = vector.broadcast %cst_9 : f32 to vector<16x128xf32>
    %16 = arith.mulf %15, %12 : vector<16x128xf32>
    %17 = arith.select %14, %12, %16 : vector<16x128xi1>, vector<16x128xf32>
    %18 = arith.truncf %17 : vector<16x128xf32> to vector<16x128xbf16>
    %c0_10 = arith.constant 0 : index
    %c0_11 = arith.constant 0 : index
    %19 = vector.load %arg5[%c0_10, %c0_11] : memref<128x256xbf16, #tpu.memory_space<vmem>>, vector<128x256xbf16>
    %cst_12 = arith.constant dense<0.000000e+00> : vector<16x256xf32>
    %20 = tpu.matmul %18, %19, %cst_12 {dimension_numbers = #tpu.dot_dimension_numbers<[1], [0], [0], [1], [0, 0, 1, 1], [], []>} : vector<16x128xbf16>, vector<128x256xbf16>, vector<16x256xf32> -> vector<16x256xf32>
    %21 = vector.extract_strided_slice %20 {offsets = [0, 0], sizes = [16, 128], strides = [1, 1]} : vector<16x256xf32> to vector<16x128xf32>
    %22 = vector.extract_strided_slice %20 {offsets = [0, 128], sizes = [16, 128], strides = [1, 1]} : vector<16x256xf32> to vector<16x128xf32>
    %23 = arith.truncf %22 : vector<16x128xf32> to vector<16x128xbf16>
    %c0_13 = arith.constant 0 : index
    %c0_14 = arith.constant 0 : index
    %24 = vector.load %arg7[%c0_13, %c0_14] : memref<128x128xbf16, #tpu.memory_space<vmem>>, vector<128x128xbf16>
    %cst_15 = arith.constant dense<0.000000e+00> : vector<16x128xf32>
    %25 = tpu.matmul %23, %24, %cst_15 {dimension_numbers = #tpu.dot_dimension_numbers<[1], [0], [0], [1], [0, 0, 1, 1], [], []>} : vector<16x128xbf16>, vector<128x128xbf16>, vector<16x128xf32> -> vector<16x128xf32>
    %26 = arith.addf %21, %25 : vector<16x128xf32>
    %c0_16 = arith.constant 0 : index
    %c0_17 = arith.constant 0 : index
    %27 = vector.load %arg6[%c0_16, %c0_17] : memref<1x128xf32, #tpu.memory_space<vmem>>, vector<1x128xf32>
    %28 = vector.broadcast %27 : vector<1x128xf32> to vector<16x128xf32>
    %29 = arith.addf %26, %28 : vector<16x128xf32>
    %cst_18 = arith.constant 0.000000e+00 : f32
    %30 = vector.broadcast %cst_18 : f32 to vector<16x128xf32>
    %31 = arith.cmpf oge, %29, %30 : vector<16x128xf32>
    %cst_19 = arith.constant 0.00999999977 : f32
    %32 = vector.broadcast %cst_19 : f32 to vector<16x128xf32>
    %33 = arith.mulf %32, %29 : vector<16x128xf32>
    %34 = arith.select %31, %29, %33 : vector<16x128xi1>, vector<16x128xf32>
    %35 = arith.truncf %34 : vector<16x128xf32> to vector<16x128xbf16>
    %c0_20 = arith.constant 0 : index
    %c0_21 = arith.constant 0 : index
    %36 = vector.load %arg8[%c0_20, %c0_21] : memref<128x256xbf16, #tpu.memory_space<vmem>>, vector<128x256xbf16>
    %cst_22 = arith.constant dense<0.000000e+00> : vector<16x256xf32>
    %37 = tpu.matmul %35, %36, %cst_22 {dimension_numbers = #tpu.dot_dimension_numbers<[1], [0], [0], [1], [0, 0, 1, 1], [], []>} : vector<16x128xbf16>, vector<128x256xbf16>, vector<16x256xf32> -> vector<16x256xf32>
    %38 = vector.extract_strided_slice %37 {offsets = [0, 0], sizes = [16, 128], strides = [1, 1]} : vector<16x256xf32> to vector<16x128xf32>
    %39 = vector.extract_strided_slice %37 {offsets = [0, 128], sizes = [16, 128], strides = [1, 1]} : vector<16x256xf32> to vector<16x128xf32>
    %40 = arith.truncf %39 : vector<16x128xf32> to vector<16x128xbf16>
    %c0_23 = arith.constant 0 : index
    %c0_24 = arith.constant 0 : index
    %41 = vector.load %arg10[%c0_23, %c0_24] : memref<128x128xbf16, #tpu.memory_space<vmem>>, vector<128x128xbf16>
    %cst_25 = arith.constant dense<0.000000e+00> : vector<16x128xf32>
    %42 = tpu.matmul %40, %41, %cst_25 {dimension_numbers = #tpu.dot_dimension_numbers<[1], [0], [0], [1], [0, 0, 1, 1], [], []>} : vector<16x128xbf16>, vector<128x128xbf16>, vector<16x128xf32> -> vector<16x128xf32>
    %43 = arith.addf %38, %42 : vector<16x128xf32>
    %c0_26 = arith.constant 0 : index
    %c0_27 = arith.constant 0 : index
    %44 = vector.load %arg9[%c0_26, %c0_27] : memref<1x128xf32, #tpu.memory_space<vmem>>, vector<1x128xf32>
    %45 = vector.broadcast %44 : vector<1x128xf32> to vector<16x128xf32>
    %46 = arith.addf %43, %45 : vector<16x128xf32>
    %c0_28 = arith.constant 0 : index
    %c0_29 = arith.constant 0 : index
    %47 = vector.load %arg11[%c0_28, %c0_29] : memref<16x128xf32, #tpu.memory_space<vmem>>, vector<16x128xf32>
    tpu.vector_store %arg11[%c0_28, %c0_29], %46 {strides = array<i32>} : memref<16x128xf32, #tpu.memory_space<vmem>>, vector<16x128xf32>,
    return
  }
  func.func @transform_0(%arg0: i32) -> (i32, i32) {
    %c0_i32 = arith.constant 0 : i32
    %c0_i32_0 = arith.constant 0 : i32
    return %arg0, %c0_i32 : i32, i32
  }
  func.func @transform_1(%arg0: i32) -> (i32, i32) {
    %c0_i32 = arith.constant 0 : i32
    %c0_i32_0 = arith.constant 0 : i32
    %c0_i32_1 = arith.constant 0 : i32
    return %c0_i32, %c0_i32_0 : i32, i32
  }
  func.func @transform_2(%arg0: i32) -> (i32, i32) {
    %c0_i32 = arith.constant 0 : i32
    %c0_i32_0 = arith.constant 0 : i32
    %c0_i32_1 = arith.constant 0 : i32
    return %c0_i32, %c0_i32_0 : i32, i32
  }
  func.func @transform_3(%arg0: i32) -> (i32, i32) {
    %c0_i32 = arith.constant 0 : i32
    %c0_i32_0 = arith.constant 0 : i32
    %c0_i32_1 = arith.constant 0 : i32
    return %c0_i32, %c0_i32_0 : i32, i32
  }
  func.func @transform_4(%arg0: i32) -> (i32, i32) {
    %c0_i32 = arith.constant 0 : i32
    %c0_i32_0 = arith.constant 0 : i32
    %c0_i32_1 = arith.constant 0 : i32
    return %c0_i32, %c0_i32_0 : i32, i32
  }
  func.func @transform_5(%arg0: i32) -> (i32, i32) {
    %c0_i32 = arith.constant 0 : i32
    %c0_i32_0 = arith.constant 0 : i32
    %c0_i32_1 = arith.constant 0 : i32
    return %c0_i32, %c0_i32_0 : i32, i32
  }
  func.func @transform_6(%arg0: i32) -> (i32, i32) {
    %c0_i32 = arith.constant 0 : i32
    %c0_i32_0 = arith.constant 0 : i32
    %c0_i32_1 = arith.constant 0 : i32
    return %c0_i32, %c0_i32_0 : i32, i32
  }
  func.func @transform_7(%arg0: i32) -> (i32, i32) {
    %c0_i32 = arith.constant 0 : i32
    %c0_i32_0 = arith.constant 0 : i32
    %c0_i32_1 = arith.constant 0 : i32
    return %c0_i32, %c0_i32_0 : i32, i32
  }
  func.func @transform_8(%arg0: i32) -> (i32, i32) {
    %c0_i32 = arith.constant 0 : i32
    %c0_i32_0 = arith.constant 0 : i32
    %c0_i32_1 = arith.constant 0 : i32
    return %c0_i32, %c0_i32_0 : i32, i32
  }
  func.func @transform_9(%arg0: i32) -> (i32, i32) {
    %c0_i32 = arith.constant 0 : i32
    %c0_i32_0 = arith.constant 0 : i32
    %c0_i32_1 = arith.constant 0 : i32
    return %c0_i32, %c0_i32_0 : i32, i32
  }
  func.func @transform_10(%arg0: i32) -> (i32, i32) {
    %c0_i32 = arith.constant 0 : i32
    %c0_i32_0 = arith.constant 0 : i32
    return %arg0, %c0_i32 : i32, i32
  }
}

module attributes {stable_mosaic.version = 11 : i64} {
  func.func @_fused_lora_mlp_kernel(%arg0: i32, %arg1: memref<16x256xf32, #tpu.memory_space<vmem>>, %arg2: memref<256x256xbf16, #tpu.memory_space<vmem>>, %arg3: memref<1x128xf32, #tpu.memory_space<vmem>>, %arg4: memref<128x128xbf16, #tpu.memory_space<vmem>>, %arg5: memref<128x256xbf16, #tpu.memory_space<vmem>>, %arg6: memref<1x128xf32, #tpu.memory_space<vmem>>, %arg7: memref<128x128xbf16, #tpu.memory_space<vmem>>, %arg8: memref<128x256xbf16, #tpu.memory_space<vmem>>, %arg9: memref<1x128xf32, #tpu.memory_space<vmem>>, %arg10: memref<128x128xbf16, #tpu.memory_space<vmem>>, %arg11: memref<16x128xf32, #tpu.memory_space<vmem>>) attributes {dimension_semantics = [#tpu.dimension_semantics<parallel>], iteration_bounds = array<i64: 1>, scalar_prefetch = 0 : i64, scratch_operands = 0 : i64, tpu.core_type = #tpu.core_type<tc>, window_params = [{transform_indices = @transform_0, window_bounds = array<i64: 16, 256>}, {pipeline_mode = #tpu.pipeline_mode<synchronous>, transform_indices = @transform_1, window_bounds = array<i64: 256, 256>}, {pipeline_mode = #tpu.pipeline_mode<synchronous>, transform_indices = @transform_2, window_bounds = array<i64: 1, 128>}, {pipeline_mode = #tpu.pipeline_mode<synchronous>, transform_indices = @transform_3, window_bounds = array<i64: 128, 128>}, {pipeline_mode = #tpu.pipeline_mode<synchronous>, transform_indices = @transform_4, window_bounds = array<i64: 128, 256>}, {pipeline_mode = #tpu.pipeline_mode<synchronous>, transform_indices = @transform_5, window_bounds = array<i64: 1, 128>}, {pipeline_mode = #tpu.pipeline_mode<synchronous>, transform_indices = @transform_6, window_bounds = array<i64: 128, 128>}, {pipeline_mode = #tpu.pipeline_mode<synchronous>, transform_indices = @transform_7, window_bounds = array<i64: 128, 256>}, {pipeline_mode = #tpu.pipeline_mode<synchronous>, transform_indices = @transform_8, window_bounds = array<i64: 1, 128>}, {pipeline_mode = #tpu.pipeline_mode<synchronous>, transform_indices = @transform_9, window_bounds = array<i64: 128, 128>}, {transform_indices = @transform_10, window_bounds = array<i64: 16, 128>}]} {
    %c0 = arith.constant 0 : index
    %c0_0 = arith.constant 0 : index
    %0 = vector.load %arg1[%c0, %c0_0] : memref<16x256xf32, #tpu.memory_space<vmem>>, vector<16x256xf32>
    %1 = arith.truncf %0 : vector<16x256xf32> to vector<16x256xbf16>
    %c0_1 = arith.constant 0 : index
    %c0_2 = arith.constant 0 : index
    %2 = vector.load %arg2[%c0_1, %c0_2] : memref<256x256xbf16, #tpu.memory_space<vmem>>, vector<256x256xbf16>
    %cst = arith.constant dense<0.000000e+00> : vector<16x256xf32>
    %3 = tpu.matmul %1, %2, %cst {dimension_numbers = #tpu.dot_dimension_numbers<[1], [0], [0], [1], [0, 0, 1, 1], [], []>} : vector<16x256xbf16>, vector<256x256xbf16>, vector<16x256xf32> -> vector<16x256xf32>
    %4 = vector.extract_strided_slice %3 {offsets = [0, 0], sizes = [16, 128], strides = [1, 1]} : vector<16x256xf32> to vector<16x128xf32>
    %5 = vector.extract_strided_slice %3 {offsets = [0, 128], sizes = [16, 128], strides = [1, 1]} : vector<16x256xf32> to vector<16x128xf32>
    %6 = arith.truncf %5 : vector<16x128xf32> to vector<16x128xbf16>
    %c0_3 = arith.constant 0 : index
    %c0_4 = arith.constant 0 : index
    %7 = vector.load %arg4[%c0_3, %c0_4] : memref<128x128xbf16, #tpu.memory_space<vmem>>, vector<128x128xbf16>
    %cst_5 = arith.constant dense<0.000000e+00> : vector<16x128xf32>
    %8 = tpu.matmul %6, %7, %cst_5 {dimension_numbers = #tpu.dot_dimension_numbers<[1], [0], [0], [1], [0, 0, 1, 1], [], []>} : vector<16x128xbf16>, vector<128x128xbf16>, vector<16x128xf32> -> vector<16x128xf32>
    %9 = arith.addf %4, %8 : vector<16x128xf32>
    %c0_6 = arith.constant 0 : index
    %c0_7 = arith.constant 0 : index
    %10 = vector.load %arg3[%c0_6, %c0_7] : memref<1x128xf32, #tpu.memory_space<vmem>>, vector<1x128xf32>
    %11 = vector.broadcast %10 : vector<1x128xf32> to vector<16x128xf32>
    %12 = arith.addf %9, %11 : vector<16x128xf32>
    %cst_8 = arith.constant 0.000000e+00 : f32
    %13 = vector.broadcast %cst_8 : f32 to vector<16x128xf32>
    %14 = arith.cmpf oge, %12, %13 : vector<16x128xf32>
    %cst_9 = arith.constant 0.00999999977 : f32
    %15 = vector.broadcast %cst_9 : f32 to vector<16x128xf32>
    %16 = arith.mulf %15, %12 : vector<16x128xf32>
    %17 = arith.select %14, %12, %16 : vector<16x128xi1>, vector<16x128xf32>
    %18 = arith.truncf %17 : vector<16x128xf32> to vector<16x128xbf16>
    %c0_10 = arith.constant 0 : index
    %c0_11 = arith.constant 0 : index
    %19 = vector.load %arg5[%c0_10, %c0_11] : memref<128x256xbf16, #tpu.memory_space<vmem>>, vector<128x256xbf16>
    %cst_12 = arith.constant dense<0.000000e+00> : vector<16x256xf32>
    %20 = tpu.matmul %18, %19, %cst_12 {dimension_numbers = #tpu.dot_dimension_numbers<[1], [0], [0], [1], [0, 0, 1, 1], [], []>} : vector<16x128xbf16>, vector<128x256xbf16>, vector<16x256xf32> -> vector<16x256xf32>
    %21 = vector.extract_strided_slice %20 {offsets = [0, 0], sizes = [16, 128], strides = [1, 1]} : vector<16x256xf32> to vector<16x128xf32>
    %22 = vector.extract_strided_slice %20 {offsets = [0, 128], sizes = [16, 128], strides = [1, 1]} : vector<16x256xf32> to vector<16x128xf32>
    %23 = arith.truncf %22 : vector<16x128xf32> to vector<16x128xbf16>
    %c0_13 = arith.constant 0 : index
    %c0_14 = arith.constant 0 : index
    %24 = vector.load %arg7[%c0_13, %c0_14] : memref<128x128xbf16, #tpu.memory_space<vmem>>, vector<128x128xbf16>
    %cst_15 = arith.constant dense<0.000000e+00> : vector<16x128xf32>
    %25 = tpu.matmul %23, %24, %cst_15 {dimension_numbers = #tpu.dot_dimension_numbers<[1], [0], [0], [1], [0, 0, 1, 1], [], []>} : vector<16x128xbf16>, vector<128x128xbf16>, vector<16x128xf32> -> vector<16x128xf32>
    %26 = arith.addf %21, %25 : vector<16x128xf32>
    %c0_16 = arith.constant 0 : index
    %c0_17 = arith.constant 0 : index
    %27 = vector.load %arg6[%c0_16, %c0_17] : memref<1x128xf32, #tpu.memory_space<vmem>>, vector<1x128xf32>
    %28 = vector.broadcast %27 : vector<1x128xf32> to vector<16x128xf32>
    %29 = arith.addf %26, %28 : vector<16x128xf32>
    %cst_18 = arith.constant 0.000000e+00 : f32
    %30 = vector.broadcast %cst_18 : f32 to vector<16x128xf32>
    %31 = arith.cmpf oge, %29, %30 : vector<16x128xf32>
    %cst_19 = arith.constant 0.00999999977 : f32
    %32 = vector.broadcast %cst_19 : f32 to vector<16x128xf32>
    %33 = arith.mulf %32, %29 : vector<16x128xf32>
    %34 = arith.select %31, %29, %33 : vector<16x128xi1>, vector<16x128xf32>
    %35 = arith.truncf %34 : vector<16x128xf32> to vector<16x128xbf16>
    %c0_20 = arith.constant 0 : index
    %c0_21 = arith.constant 0 : index
    %36 = vector.load %arg8[%c0_20, %c0_21] : memref<128x256xbf16, #tpu.memory_space<vmem>>, vector<128x256xbf16>
    %cst_22 = arith.constant dense<0.000000e+00> : vector<16x256xf32>
    %37 = tpu.matmul %35, %36, %cst_22 {dimension_numbers = #tpu.dot_dimension_numbers<[1], [0], [0], [1], [0, 0, 1, 1], [], []>} : vector<16x128xbf16>, vector<128x256xbf16>, vector<16x256xf32> -> vector<16x256xf32>
    %38 = vector.extract_strided_slice %37 {offsets = [0, 0], sizes = [16, 128], strides = [1, 1]} : vector<16x256xf32> to vector<16x128xf32>
    %39 = vector.extract_strided_slice %37 {offsets = [0, 128], sizes = [16, 128], strides = [1, 1]} : vector<16x256xf32> to vector<16x128xf32>
    %40 = arith.truncf %39 : vector<16x128xf32> to vector<16x128xbf16>
    %c0_23 = arith.constant 0 : index
    %c0_24 = arith.constant 0 : index
    %41 = vector.load %arg10[%c0_23, %c0_24] : memref<128x128xbf16, #tpu.memory_space<vmem>>, vector<128x128xbf16>
    %cst_25 = arith.constant dense<0.000000e+00> : vector<16x128xf32>
    %42 = tpu.matmul %40, %41, %cst_25 {dimension_numbers = #tpu.dot_dimension_numbers<[1], [0], [0], [1], [0, 0, 1, 1], [], []>} : vector<16x128xbf16>, vector<128x128xbf16>, vector<16x128xf32> -> vector<16x128xf32>
    %43 = arith.addf %38, %42 : vector<16x128xf32>
    %c0_26 = arith.constant 0 : index
    %c0_27 = arith.constant 0 : index
    %44 = vector.load %arg9[%c0_26, %c0_27] : memref<1x128xf32, #tpu.memory_space<vmem>>, vector<1x128xf32>
    %45 = vector.broadcast %44 : vector<1x128xf32> to vector<16x128xf32>
    %46 = arith.addf %43, %45 : vector<16x128xf32>
    %c0_28 = arith.constant 0 : index
    %c0_29 = arith.constant 0 : index
    %47 = vector.load %arg11[%c0_28, %c0_29] : memref<16x128xf32, #tpu.memory_space<vmem>>, vector<16x128xf32>
    tpu.vector_store %arg11[%c0_28, %c0_29], %46 {strides = array<i32>} : memref<16x128xf32, #tpu.memory_space<vmem>>, vector<16x128xf32>,
    return
  }
  func.func @transform_0(%arg0: i32) -> (i32, i32) {
    %c0_i32 = arith.constant 0 : i32
    %c0_i32_0 = arith.constant 0 : i32
    return %arg0, %c0_i32 : i32, i32
  }
  func.func @transform_1(%arg0: i32) -> (i32, i32) {
    %c0_i32 = arith.constant 0 : i32
    %c0_i32_0 = arith.constant 0 : i32
    %c0_i32_1 = arith.constant 0 : i32
    return %c0_i32, %c0_i32_0 : i32, i32
  }
  func.func @transform_2(%arg0: i32) -> (i32, i32) {
    %c0_i32 = arith.constant 0 : i32
    %c0_i32_0 = arith.constant 0 : i32
    %c0_i32_1 = arith.constant 0 : i32
    return %c0_i32, %c0_i32_0 : i32, i32
  }
  func.func @transform_3(%arg0: i32) -> (i32, i32) {
    %c0_i32 = arith.constant 0 : i32
    %c0_i32_0 = arith.constant 0 : i32
    %c0_i32_1 = arith.constant 0 : i32
    return %c0_i32, %c0_i32_0 : i32, i32
  }
  func.func @transform_4(%arg0: i32) -> (i32, i32) {
    %c0_i32 = arith.constant 0 : i32
    %c0_i32_0 = arith.constant 0 : i32
    %c0_i32_1 = arith.constant 0 : i32
    return %c0_i32, %c0_i32_0 : i32, i32
  }
  func.func @transform_5(%arg0: i32) -> (i32, i32) {
    %c0_i32 = arith.constant 0 : i32
    %c0_i32_0 = arith.constant 0 : i32
    %c0_i32_1 = arith.constant 0 : i32
    return %c0_i32, %c0_i32_0 : i32, i32
  }
  func.func @transform_6(%arg0: i32) -> (i32, i32) {
    %c0_i32 = arith.constant 0 : i32
    %c0_i32_0 = arith.constant 0 : i32
    %c0_i32_1 = arith.constant 0 : i32
    return %c0_i32, %c0_i32_0 : i32, i32
  }
  func.func @transform_7(%arg0: i32) -> (i32, i32) {
    %c0_i32 = arith.constant 0 : i32
    %c0_i32_0 = arith.constant 0 : i32
    %c0_i32_1 = arith.constant 0 : i32
    return %c0_i32, %c0_i32_0 : i32, i32
  }
  func.func @transform_8(%arg0: i32) -> (i32, i32) {
    %c0_i32 = arith.constant 0 : i32
    %c0_i32_0 = arith.constant 0 : i32
    %c0_i32_1 = arith.constant 0 : i32
    return %c0_i32, %c0_i32_0 : i32, i32
  }
  func.func @transform_9(%arg0: i32) -> (i32, i32) {
    %c0_i32 = arith.constant 0 : i32
    %c0_i32_0 = arith.constant 0 : i32
    %c0_i32_1 = arith.constant 0 : i32
    return %c0_i32, %c0_i32_0 : i32, i32
  }
  func.func @transform_10(%arg0: i32) -> (i32, i32) {
    %c0_i32 = arith.constant 0 : i32
    %c0_i32_0 = arith.constant 0 : i32
    return %arg0, %c0_i32 : i32, i32
  }
}

</mosaic_0001>

<llo_original>
// kernel: tpu_custom_call.1
$region0: #{tpu_custom_call.1}
  #allocation0 [shape = 'u32[]', space=smem, size = 0x4, offset = 0x4, fixed_abs, tag = 'smem constant byte address 0x4 - core index']
  #allocation1 [shape = 'u32[144,128]{1,0:T(1,128)}', space=vmem, size = 0x12000, scoped, tag = 'internal scratch']
  %s0 = inlined_call_operand.hbm [shape: f32[16,256], index: 0, kind: input, shape index: {}]
  %s1 = inlined_call_operand.hbm [shape: bf16[256,256], index: 1, kind: input, shape index: {}]
  %s2 = inlined_call_operand.vmem [shape: f32[1,128], index: 2, kind: input, shape index: {}]
  %s3 = inlined_call_operand.hbm [shape: bf16[128,128], index: 3, kind: input, shape index: {}]
  %s4 = inlined_call_operand.hbm [shape: bf16[128,256], index: 4, kind: input, shape index: {}]
  %s5 = inlined_call_operand.vmem [shape: f32[1,128], index: 5, kind: input, shape index: {}]
  %s6 = inlined_call_operand.hbm [shape: bf16[128,128], index: 6, kind: input, shape index: {}]
  %s7 = inlined_call_operand.hbm [shape: bf16[128,256], index: 7, kind: input, shape index: {}]
  %s8 = inlined_call_operand.vmem [shape: f32[1,128], index: 8, kind: input, shape index: {}]
  %s9 = inlined_call_operand.hbm [shape: bf16[128,128], index: 9, kind: input, shape index: {}]
  %s10 = inlined_call_operand.hbm [shape: f32[16,128], index: 10, kind: output, shape index: {}]
  %s11 = sld [smem:[#allocation0]]
  $region78: #{tpu_custom_call.1} parent=0
    _
  %s13 = ssub.s32 1, %s11
  %s14 = scalar_select 0, %s13, %s11
  $region1: #{tpu_custom_call.1} parent=0
    #allocation2 [shape = 'u8[16384]{0}', space=vmem, size = 0x4000, scoped, tag = 'input window, operand 0, single buffered']
    #allocation3 [shape = 's32[1]{0}', space=sflag, size = 0x4, scoped, tag = 'scoped memory for tpu_custom_call.1']
    #allocation4 [shape = 's32[1]{0}', space=sflag, size = 0x4, scoped, tag = 'scoped memory for tpu_custom_call.1']
    #allocation5 [shape = 'u8[131072]{0}', space=vmem, size = 0x20000, scoped, tag = 'input window, operand 1, single buffered']
    #allocation6 [shape = 's32[1]{0}', space=sflag, size = 0x4, scoped, tag = 'scoped memory for tpu_custom_call.1']
    #allocation7 [shape = 'u8[32768]{0}', space=vmem, size = 0x8000, scoped, tag = 'input window, operand 3, single buffered']
    #allocation8 [shape = 'u8[65536]{0}', space=vmem, size = 0x10000, scoped, tag = 'input window, operand 4, single buffered']
    #allocation9 [shape = 's32[1]{0}', space=sflag, size = 0x4, scoped, tag = 'scoped memory for tpu_custom_call.1']
    #allocation10 [shape = 'u8[32768]{0}', space=vmem, size = 0x8000, scoped, tag = 'input window, operand 6, single buffered']
    #allocation11 [shape = 'u8[65536]{0}', space=vmem, size = 0x10000, scoped, tag = 'input window, operand 7, single buffered']
    #allocation12 [shape = 's32[1]{0}', space=sflag, size = 0x4, scoped, tag = 'scoped memory for tpu_custom_call.1']
    #allocation13 [shape = 'u8[32768]{0}', space=vmem, size = 0x8000, scoped, tag = 'input window, operand 9, single buffered']
    #allocation14 [shape = 'u8[8192]{0}', space=vmem, size = 0x2000, scoped, tag = 'output window, operand 0, single buffered']
    %15 = vsyncpa [#allocation3], 0
    %16 = vsyncpa [#allocation6], 0
    %17 = vsyncpa [#allocation9], 0
    %18 = vsyncpa [#allocation12], 0
    %19 = vsyncpa [#allocation4], 0
    // Predicated region
    $region2: #{tpu_custom_call.1} parent=1 // pred_check
      _
    $region3: #{tpu_custom_call.1} parent=1 // pred_check_branch
      %21 = sbr.rel (0) target = $region5
    $region4: #{tpu_custom_call.1} parent=1 // pred_region
      %s23 = ssub.s32 512, 512
      %24 = vsyncadd [#allocation3], %s23
      %s25 = sshll.u32 [#allocation2], 4
      %s26 = int_to_ptr.vmem [resolvable:$true] %s25
      %31 = dma.hbm_to_vmem [thread:$0]  %s0, 512, %s26, [#allocation3], 256, 256, 16
    $region5: #{tpu_custom_call.1} parent=1 // pred_fallthru
      _
    // Predicated region
    $region6: #{tpu_custom_call.1} parent=1 // pred_check
      _
    $region7: #{tpu_custom_call.1} parent=1 // pred_check_branch
      %33 = sbr.rel (0) target = $region9
    $region8: #{tpu_custom_call.1} parent=1 // pred_region
      %s35 = ssub.s32 4096, 4096
      %36 = vsyncadd [#allocation6], %s35
      %s37 = sshll.u32 [#allocation5], 4
      %s38 = int_to_ptr.vmem [resolvable:$true] %s37
      %43 = dma.hbm_to_vmem [thread:$0]  %s1, 4096, %s38, [#allocation6], 128, 128, 8
    $region9: #{tpu_custom_call.1} parent=1 // pred_fallthru
      _
    // Predicated region
    $region10: #{tpu_custom_call.1} parent=1 // pred_check
      _
    $region11: #{tpu_custom_call.1} parent=1 // pred_check_branch
      %45 = sbr.rel (0) target = $region13
    $region12: #{tpu_custom_call.1} parent=1 // pred_region
      _
    $region13: #{tpu_custom_call.1} parent=1 // pred_fallthru
      _
    // Predicated region
    $region14: #{tpu_custom_call.1} parent=1 // pred_check
      _
    $region15: #{tpu_custom_call.1} parent=1 // pred_check_branch
      %47 = sbr.rel (0) target = $region17
    $region16: #{tpu_custom_call.1} parent=1 // pred_region
      %s49 = ssub.s32 1024, 1024
      %50 = vsyncadd [#allocation6], %s49
      %s51 = sshll.u32 [#allocation7], 4
      %s52 = int_to_ptr.vmem [resolvable:$true] %s51
      %57 = dma.hbm_to_vmem [thread:$0]  %s3, 1024, %s52, [#allocation6], 64, 64, 4
    $region17: #{tpu_custom_call.1} parent=1 // pred_fallthru
      _
    // Predicated region
    $region18: #{tpu_custom_call.1} parent=1 // pred_check
      _
    $region19: #{tpu_custom_call.1} parent=1 // pred_check_branch
      %59 = sbr.rel (0) target = $region21
    $region20: #{tpu_custom_call.1} parent=1 // pred_region
      %s61 = ssub.s32 2048, 2048
      %62 = vsyncadd [#allocation9], %s61
      %s63 = sshll.u32 [#allocation8], 4
      %s64 = int_to_ptr.vmem [resolvable:$true] %s63
      %69 = dma.hbm_to_vmem [thread:$0]  %s4, 2048, %s64, [#allocation9], 128, 128, 8
    $region21: #{tpu_custom_call.1} parent=1 // pred_fallthru
      _
    // Predicated region
    $region22: #{tpu_custom_call.1} parent=1 // pred_check
      _
    $region23: #{tpu_custom_call.1} parent=1 // pred_check_branch
      %71 = sbr.rel (0) target = $region25
    $region24: #{tpu_custom_call.1} parent=1 // pred_region
      _
    $region25: #{tpu_custom_call.1} parent=1 // pred_fallthru
      _
    // Predicated region
    $region26: #{tpu_custom_call.1} parent=1 // pred_check
      _
    $region27: #{tpu_custom_call.1} parent=1 // pred_check_branch
      %73 = sbr.rel (0) target = $region29
    $region28: #{tpu_custom_call.1} parent=1 // pred_region
      %s75 = ssub.s32 1024, 1024
      %76 = vsyncadd [#allocation9], %s75
      %s77 = sshll.u32 [#allocation10], 4
      %s78 = int_to_ptr.vmem [resolvable:$true] %s77
      %83 = dma.hbm_to_vmem [thread:$0]  %s6, 1024, %s78, [#allocation9], 64, 64, 4
    $region29: #{tpu_custom_call.1} parent=1 // pred_fallthru
      _
    // Predicated region
    $region30: #{tpu_custom_call.1} parent=1 // pred_check
      _
    $region31: #{tpu_custom_call.1} parent=1 // pred_check_branch
      %85 = sbr.rel (0) target = $region33
    $region32: #{tpu_custom_call.1} parent=1 // pred_region
      %s87 = ssub.s32 2048, 2048
      %88 = vsyncadd [#allocation12], %s87
      %s89 = sshll.u32 [#allocation11], 4
      %s90 = int_to_ptr.vmem [resolvable:$true] %s89
      %95 = dma.hbm_to_vmem [thread:$0]  %s7, 2048, %s90, [#allocation12], 128, 128, 8
    $region33: #{tpu_custom_call.1} parent=1 // pred_fallthru
      _
    // Predicated region
    $region34: #{tpu_custom_call.1} parent=1 // pred_check
      _
    $region35: #{tpu_custom_call.1} parent=1 // pred_check_branch
      %97 = sbr.rel (0) target = $region37
    $region36: #{tpu_custom_call.1} parent=1 // pred_region
      _
    $region37: #{tpu_custom_call.1} parent=1 // pred_fallthru
      _
    // Predicated region
    $region38: #{tpu_custom_call.1} parent=1 // pred_check
      _
    $region39: #{tpu_custom_call.1} parent=1 // pred_check_branch
      %99 = sbr.rel (0) target = $region41
    $region40: #{tpu_custom_call.1} parent=1 // pred_region
      %s101 = ssub.s32 1024, 1024
      %102 = vsyncadd [#allocation12], %s101
      %s103 = sshll.u32 [#allocation13], 4
      %s104 = int_to_ptr.vmem [resolvable:$true] %s103
      %109 = dma.hbm_to_vmem [thread:$0]  %s9, 1024, %s104, [#allocation12], 64, 64, 4
    $region41: #{tpu_custom_call.1} parent=1 // pred_fallthru
      _
    // Predicated region
    $region42: #{tpu_custom_call.1} parent=1 // pred_check
      _
    $region43: #{tpu_custom_call.1} parent=1 // pred_check_branch
      %111 = sbr.rel (0) target = $region45
    $region44: #{tpu_custom_call.1} parent=1 // pred_region
      %112 = dma.done [#allocation3], 512
    $region45: #{tpu_custom_call.1} parent=1 // pred_fallthru
      _
    // Predicated region
    $region46: #{tpu_custom_call.1} parent=1 // pred_check
      _
    $region47: #{tpu_custom_call.1} parent=1 // pred_check_branch
      %114 = sbr.rel (0) target = $region49
    $region48: #{tpu_custom_call.1} parent=1 // pred_region
      %115 = dma.done [#allocation6], 4096
    $region49: #{tpu_custom_call.1} parent=1 // pred_fallthru
      _
    // Predicated region
    $region50: #{tpu_custom_call.1} parent=1 // pred_check
      _
    $region51: #{tpu_custom_call.1} parent=1 // pred_check_branch
      %117 = sbr.rel (0) target = $region53
    $region52: #{tpu_custom_call.1} parent=1 // pred_region
      %118 = dma.done [#allocation6], 1024
    $region53: #{tpu_custom_call.1} parent=1 // pred_fallthru
      _
    // Predicated region
    $region54: #{tpu_custom_call.1} parent=1 // pred_check
      _
    $region55: #{tpu_custom_call.1} parent=1 // pred_check_branch
      %120 = sbr.rel (0) target = $region57
    $region56: #{tpu_custom_call.1} parent=1 // pred_region
      %121 = dma.done [#allocation9], 2048
    $region57: #{tpu_custom_call.1} parent=1 // pred_fallthru
      _
    // Predicated region
    $region58: #{tpu_custom_call.1} parent=1 // pred_check
      _
    $region59: #{tpu_custom_call.1} parent=1 // pred_check_branch
      %123 = sbr.rel (0) target = $region61
    $region60: #{tpu_custom_call.1} parent=1 // pred_region
      %124 = dma.done [#allocation9], 1024
    $region61: #{tpu_custom_call.1} parent=1 // pred_fallthru
      _
    // Predicated region
    $region62: #{tpu_custom_call.1} parent=1 // pred_check
      _
    $region63: #{tpu_custom_call.1} parent=1 // pred_check_branch
      %126 = sbr.rel (0) target = $region65
    $region64: #{tpu_custom_call.1} parent=1 // pred_region
      %127 = dma.done [#allocation12], 2048
    $region65: #{tpu_custom_call.1} parent=1 // pred_fallthru
      _
    // Predicated region
    $region66: #{tpu_custom_call.1} parent=1 // pred_check
      _
    $region67: #{tpu_custom_call.1} parent=1 // pred_check_branch
      %129 = sbr.rel (0) target = $region69
    $region68: #{tpu_custom_call.1} parent=1 // pred_region
      %130 = dma.done [#allocation12], 1024
    $region69: #{tpu_custom_call.1} parent=1 // pred_fallthru
      _
    %v132 = vld [vmem:[#allocation2] sm:$0xff]
    %v133 = vld [vmem:[#allocation2 + $0x8] sm:$0xff]
    %v134 = vld [vmem:[#allocation2 + $0x10] sm:$0xff]
    %v135 = vld [vmem:[#allocation2 + $0x18] sm:$0xff]
    %v136 = vpack.c.bf16 %v134, %v132
    %v137 = vpack.c.bf16 %v135, %v133
    %v138 = vld [vmem:[#allocation5] sm:$0xff]
    %v139 = vld [vmem:[#allocation5 + $0x8] sm:$0xff]
    %v140 = vld [vmem:[#allocation5 + $0x10] sm:$0xff]
    %v141 = vld [vmem:[#allocation5 + $0x18] sm:$0xff]
    %v142 = vld [vmem:[#allocation5 + $0x20] sm:$0xff]
    %v143 = vld [vmem:[#allocation5 + $0x28] sm:$0xff]
    %v144 = vld [vmem:[#allocation5 + $0x30] sm:$0xff]
    %v145 = vld [vmem:[#allocation5 + $0x38] sm:$0xff]
    %v146 = vld [vmem:[#allocation5 + $0x40] sm:$0xff]
    %v147 = vld [vmem:[#allocation5 + $0x48] sm:$0xff]
    %v148 = vld [vmem:[#allocation5 + $0x50] sm:$0xff]
    %v149 = vld [vmem:[#allocation5 + $0x58] sm:$0xff]
    %v150 = vld [vmem:[#allocation5 + $0x60] sm:$0xff]
    %v151 = vld [vmem:[#allocation5 + $0x68] sm:$0xff]
    %v152 = vld [vmem:[#allocation5 + $0x70] sm:$0xff]
    %v153 = vld [vmem:[#allocation5 + $0x78] sm:$0xff]
    %v154 = vld [vmem:[#allocation5 + $0x80] sm:$0xff]
    %v155 = vld [vmem:[#allocation5 + $0x88] sm:$0xff]
    %v156 = vld [vmem:[#allocation5 + $0x90] sm:$0xff]
    %v157 = vld [vmem:[#allocation5 + $0x98] sm:$0xff]
    %v158 = vld [vmem:[#allocation5 + $0xa0] sm:$0xff]
    %v159 = vld [vmem:[#allocation5 + $0xa8] sm:$0xff]
    %v160 = vld [vmem:[#allocation5 + $0xb0] sm:$0xff]
    %v161 = vld [vmem:[#allocation5 + $0xb8] sm:$0xff]
    %v162 = vld [vmem:[#allocation5 + $0xc0] sm:$0xff]
    %v163 = vld [vmem:[#allocation5 + $0xc8] sm:$0xff]
    %v164 = vld [vmem:[#allocation5 + $0xd0] sm:$0xff]
    %v165 = vld [vmem:[#allocation5 + $0xd8] sm:$0xff]
    %v166 = vld [vmem:[#allocation5 + $0xe0] sm:$0xff]
    %v167 = vld [vmem:[#allocation5 + $0xe8] sm:$0xff]
    %v168 = vld [vmem:[#allocation5 + $0xf0] sm:$0xff]
    %v169 = vld [vmem:[#allocation5 + $0xf8] sm:$0xff]
    %v202 = vunpack.c.l.b16 %v138
    %v203 = vunpack.c.h.b16 %v138
    %v204 = vunpack.c.l.b16 %v139
    %v205 = vunpack.c.h.b16 %v139
    %v206 = vunpack.c.l.b16 %v140
    %v207 = vunpack.c.h.b16 %v140
    %v208 = vunpack.c.l.b16 %v141
    %v209 = vunpack.c.h.b16 %v141
    %v210 = vunpack.c.l.b16 %v142
    %v211 = vunpack.c.h.b16 %v142
    %v212 = vunpack.c.l.b16 %v143
    %v213 = vunpack.c.h.b16 %v143
    %v214 = vunpack.c.l.b16 %v144
    %v215 = vunpack.c.h.b16 %v144
    %v216 = vunpack.c.l.b16 %v145
    %v217 = vunpack.c.h.b16 %v145
    %v218 = vunpack.c.l.b16 %v146
    %v219 = vunpack.c.h.b16 %v146
    %v220 = vunpack.c.l.b16 %v147
    %v221 = vunpack.c.h.b16 %v147
    %v222 = vunpack.c.l.b16 %v148
    %v223 = vunpack.c.h.b16 %v148
    %v224 = vunpack.c.l.b16 %v149
    %v225 = vunpack.c.h.b16 %v149
    %v226 = vunpack.c.l.b16 %v150
    %v227 = vunpack.c.h.b16 %v150
    %v228 = vunpack.c.l.b16 %v151
    %v229 = vunpack.c.h.b16 %v151
    %v230 = vunpack.c.l.b16 %v152
    %v231 = vunpack.c.h.b16 %v152
    %v232 = vunpack.c.l.b16 %v153
    %v233 = vunpack.c.h.b16 %v153
    %v234 = vunpack.c.l.b16 %v154
    %v235 = vunpack.c.h.b16 %v154
    %v236 = vunpack.c.l.b16 %v155
    %v237 = vunpack.c.h.b16 %v155
    %v238 = vunpack.c.l.b16 %v156
    %v239 = vunpack.c.h.b16 %v156
    %v240 = vunpack.c.l.b16 %v157
    %v241 = vunpack.c.h.b16 %v157
    %v242 = vunpack.c.l.b16 %v158
    %v243 = vunpack.c.h.b16 %v158
    %v244 = vunpack.c.l.b16 %v159
    %v245 = vunpack.c.h.b16 %v159
    %v246 = vunpack.c.l.b16 %v160
    %v247 = vunpack.c.h.b16 %v160
    %v248 = vunpack.c.l.b16 %v161
    %v249 = vunpack.c.h.b16 %v161
    %v250 = vunpack.c.l.b16 %v162
    %v251 = vunpack.c.h.b16 %v162
    %v252 = vunpack.c.l.b16 %v163
    %v253 = vunpack.c.h.b16 %v163
    %v254 = vunpack.c.l.b16 %v164
    %v255 = vunpack.c.h.b16 %v164
    %v256 = vunpack.c.l.b16 %v165
    %v257 = vunpack.c.h.b16 %v165
    %v258 = vunpack.c.l.b16 %v166
    %v259 = vunpack.c.h.b16 %v166
    %v260 = vunpack.c.l.b16 %v167
    %v261 = vunpack.c.h.b16 %v167
    %v262 = vunpack.c.l.b16 %v168
    %v263 = vunpack.c.h.b16 %v168
    %v264 = vunpack.c.l.b16 %v169
    %v265 = vunpack.c.h.b16 %v169
    %v266 = vpack.c.b16 %v204, %v202
    %v267 = vpack.c.b16 %v205, %v203
    %v268 = vpack.c.b16 %v208, %v206
    %v269 = vpack.c.b16 %v209, %v207
    %v270 = vpack.c.b16 %v212, %v210
    %v271 = vpack.c.b16 %v213, %v211
    %v272 = vpack.c.b16 %v216, %v214
    %v273 = vpack.c.b16 %v217, %v215
    %v274 = vpack.c.b16 %v220, %v218
    %v275 = vpack.c.b16 %v221, %v219
    %v276 = vpack.c.b16 %v224, %v222
    %v277 = vpack.c.b16 %v225, %v223
    %v278 = vpack.c.b16 %v228, %v226
    %v279 = vpack.c.b16 %v229, %v227
    %v280 = vpack.c.b16 %v232, %v230
    %v281 = vpack.c.b16 %v233, %v231
    %v282 = vpack.c.b16 %v236, %v234
    %v283 = vpack.c.b16 %v237, %v235
    %v284 = vpack.c.b16 %v240, %v238
    %v285 = vpack.c.b16 %v241, %v239
    %v286 = vpack.c.b16 %v244, %v242
    %v287 = vpack.c.b16 %v245, %v243
    %v288 = vpack.c.b16 %v248, %v246
    %v289 = vpack.c.b16 %v249, %v247
    %v290 = vpack.c.b16 %v252, %v250
    %v291 = vpack.c.b16 %v253, %v251
    %v292 = vpack.c.b16 %v256, %v254
    %v293 = vpack.c.b16 %v257, %v255
    %v294 = vpack.c.b16 %v260, %v258
    %v295 = vpack.c.b16 %v261, %v259
    %v296 = vpack.c.b16 %v264, %v262
    %v297 = vpack.c.b16 %v265, %v263
    %330 = vmatprep.subr.bf16.mxu0 %v281
    %331 = vmatpush1.bf16.msra.mxu0 %v280
    %332 = vmatprep.subr.bf16.mxu0 %v279
    %333 = vmatpush1.bf16.msra.mxu0 %v278
    %334 = vmatprep.subr.bf16.mxu0 %v277
    %335 = vmatpush1.bf16.msra.mxu0 %v276
    %336 = vmatprep.subr.bf16.mxu0 %v275
    %337 = vmatpush1.bf16.msra.mxu0 %v274
    %338 = vmatprep.subr.bf16.mxu0 %v273
    %339 = vmatpush1.bf16.msra.mxu0 %v272
    %340 = vmatprep.subr.bf16.mxu0 %v271
    %341 = vmatpush1.bf16.msra.mxu0 %v270
    %342 = vmatprep.subr.bf16.mxu0 %v269
    %343 = vmatpush1.bf16.msra.mxu0 %v268
    %344 = vmatprep.subr.bf16.mxu0 %v267
    %345 = vmatpush1.bf16.msra.mxu0 %v266
    %346 = vmatprep.subr.bf16.mxu0 %v297
    %347 = vmatpush2.bf16.msra.mxu0 %v296
    %348 = vmatprep.subr.bf16.mxu0 %v295
    %349 = vmatpush2.bf16.msra.mxu0 %v294
    %350 = vmatprep.subr.bf16.mxu0 %v293
    %351 = vmatpush2.bf16.msra.mxu0 %v292
    %352 = vmatprep.subr.bf16.mxu0 %v291
    %353 = vmatpush2.bf16.msra.mxu0 %v290
    %354 = vmatprep.subr.bf16.mxu0 %v289
    %355 = vmatpush2.bf16.msra.mxu0 %v288
    %356 = vmatprep.subr.bf16.mxu0 %v287
    %357 = vmatpush2.bf16.msra.mxu0 %v286
    %358 = vmatprep.subr.bf16.mxu0 %v285
    %359 = vmatpush2.bf16.msra.mxu0 %v284
    %360 = vmatprep.subr.bf16.mxu0 %v283
    %361 = vmatpush2.bf16.msra.mxu0 %v282
    %362 = vmatprep.mubr.bf16.mxu0 %v137
    %363 = vmatmul.mubr.bf16.gmra.mxu0 %v136
    %v364 = vpop.f32.mrf.mxu0
    %v365 = vadd.f32 0.0, %v364
    %v366 = vpop.f32.mrf.mxu0
    %v367 = vadd.f32 0.0, %v366
    %v368 = vpop.f32.mrf.mxu0
    %v369 = vadd.f32 0.0, %v368
    %v370 = vpop.f32.mrf.mxu0
    %v371 = vadd.f32 0.0, %v370
    %372 = vdwg.mxu0
    %v373 = vpack.c.bf16 %v371, %v367
    %v374 = vld [vmem:[#allocation7] sm:$0xf]
    %v375 = vld [vmem:[#allocation7 + $0x4] sm:$0xf]
    %v376 = vld [vmem:[#allocation7 + $0x8] sm:$0xf]
    %v377 = vld [vmem:[#allocation7 + $0xc] sm:$0xf]
    %v378 = vld [vmem:[#allocation7 + $0x10] sm:$0xf]
    %v379 = vld [vmem:[#allocation7 + $0x14] sm:$0xf]
    %v380 = vld [vmem:[#allocation7 + $0x18] sm:$0xf]
    %v381 = vld [vmem:[#allocation7 + $0x1c] sm:$0xf]
    %v382 = vld [vmem:[#allocation7 + $0x20] sm:$0xf]
    %v383 = vld [vmem:[#allocation7 + $0x24] sm:$0xf]
    %v384 = vld [vmem:[#allocation7 + $0x28] sm:$0xf]
    %v385 = vld [vmem:[#allocation7 + $0x2c] sm:$0xf]
    %v386 = vld [vmem:[#allocation7 + $0x30] sm:$0xf]
    %v387 = vld [vmem:[#allocation7 + $0x34] sm:$0xf]
    %v388 = vld [vmem:[#allocation7 + $0x38] sm:$0xf]
    %v389 = vld [vmem:[#allocation7 + $0x3c] sm:$0xf]
    %v406 = vunpack.c.l.b16 %v374
    %v407 = vunpack.c.l.b16 %v375
    %v408 = vunpack.c.l.b16 %v376
    %v409 = vunpack.c.l.b16 %v377
    %v410 = vunpack.c.l.b16 %v378
    %v411 = vunpack.c.l.b16 %v379
    %v412 = vunpack.c.l.b16 %v380
    %v413 = vunpack.c.l.b16 %v381
    %v414 = vunpack.c.l.b16 %v382
    %v415 = vunpack.c.l.b16 %v383
    %v416 = vunpack.c.l.b16 %v384
    %v417 = vunpack.c.l.b16 %v385
    %v418 = vunpack.c.l.b16 %v386
    %v419 = vunpack.c.l.b16 %v387
    %v420 = vunpack.c.l.b16 %v388
    %v421 = vunpack.c.l.b16 %v389
    %v422 = vpack.c.b16 %v407, %v406
    %v423 = vpack.c.b16 %v409, %v408
    %v424 = vpack.c.b16 %v411, %v410
    %v425 = vpack.c.b16 %v413, %v412
    %v426 = vpack.c.b16 %v415, %v414
    %v427 = vpack.c.b16 %v417, %v416
    %v428 = vpack.c.b16 %v419, %v418
    %v429 = vpack.c.b16 %v421, %v420
    %438 = vmatprep.subr.bf16.mxu0 0
    %439 = vmatpush1.bf16.msra.mxu0 %v429
    %440 = vmatprep.subr.bf16.mxu0 0
    %441 = vmatpush1.bf16.msra.mxu0 %v428
    %442 = vmatprep.subr.bf16.mxu0 0
    %443 = vmatpush1.bf16.msra.mxu0 %v427
    %444 = vmatprep.subr.bf16.mxu0 0
    %445 = vmatpush1.bf16.msra.mxu0 %v426
    %446 = vmatprep.subr.bf16.mxu0 0
    %447 = vmatpush1.bf16.msra.mxu0 %v425
    %448 = vmatprep.subr.bf16.mxu0 0
    %449 = vmatpush1.bf16.msra.mxu0 %v424
    %450 = vmatprep.subr.bf16.mxu0 0
    %451 = vmatpush1.bf16.msra.mxu0 %v423
    %452 = vmatprep.subr.bf16.mxu0 0
    %453 = vmatpush1.bf16.msra.mxu0 %v422
    %454 = vmatprep.subr.bf16.mxu0 0
    %455 = vmatpush2.bf16.msra.mxu0 0
    %456 = vmatprep.subr.bf16.mxu0 0
    %457 = vmatpush2.bf16.msra.mxu0 0
    %458 = vmatprep.subr.bf16.mxu0 0
    %459 = vmatpush2.bf16.msra.mxu0 0
    %460 = vmatprep.subr.bf16.mxu0 0
    %461 = vmatpush2.bf16.msra.mxu0 0
    %462 = vmatprep.subr.bf16.mxu0 0
    %463 = vmatpush2.bf16.msra.mxu0 0
    %464 = vmatprep.subr.bf16.mxu0 0
    %465 = vmatpush2.bf16.msra.mxu0 0
    %466 = vmatprep.subr.bf16.mxu0 0
    %467 = vmatpush2.bf16.msra.mxu0 0
    %468 = vmatprep.subr.bf16.mxu0 0
    %469 = vmatpush2.bf16.msra.mxu0 0
    %470 = vmatprep.mubr.bf16.mxu0 0
    %471 = vmatmul.mubr.bf16.gmra.mxu0 %v373
    %v472 = vpop.f32.mrf.mxu0
    %v473 = vadd.f32 0.0, %v472
    %v474 = vpop.f32.mrf.mxu0
    %v475 = vpop.f32.mrf.mxu0
    %v476 = vadd.f32 0.0, %v475
    %v477 = vpop.f32.mrf.mxu0
    %478 = vdwg.mxu0
    %v479 = vadd.f32 %v365, %v473
    %v480 = vadd.f32 %v369, %v476
    %v481 = vld [vmem:[%s2] sm:$0x1]
    %v483 = vlaneseq
    %v484 = vshrl.u32 %v483, 7
    %v485 = vsub.s32 0, %v484
    %v486 = vrot.slane %v481, %v485
    %v488 = vadd.f32 %v479, %v486
    %v489 = vadd.f32 %v480, %v486
    %vm490 = vcmp.ge.f32.partialorder %v488, 0.0
    %vm491 = vcmp.ge.f32.partialorder %v489, 0.0
    %v492 = vmul.f32 %v488, 0.01
    %v493 = vmul.f32 %v489, 0.01
    %v494 = vsel %vm490, %v488, %v492
    %v495 = vsel %vm491, %v489, %v493
    %v496 = vpack.c.bf16 %v495, %v494
    %v497 = vld [vmem:[#allocation8] sm:$0xff]
    %v498 = vld [vmem:[#allocation8 + $0x8] sm:$0xff]
    %v499 = vld [vmem:[#allocation8 + $0x10] sm:$0xff]
    %v500 = vld [vmem:[#allocation8 + $0x18] sm:$0xff]
    %v501 = vld [vmem:[#allocation8 + $0x20] sm:$0xff]
    %v502 = vld [vmem:[#allocation8 + $0x28] sm:$0xff]
    %v503 = vld [vmem:[#allocation8 + $0x30] sm:$0xff]
    %v504 = vld [vmem:[#allocation8 + $0x38] sm:$0xff]
    %v505 = vld [vmem:[#allocation8 + $0x40] sm:$0xff]
    %v506 = vld [vmem:[#allocation8 + $0x48] sm:$0xff]
    %v507 = vld [vmem:[#allocation8 + $0x50] sm:$0xff]
    %v508 = vld [vmem:[#allocation8 + $0x58] sm:$0xff]
    %v509 = vld [vmem:[#allocation8 + $0x60] sm:$0xff]
    %v510 = vld [vmem:[#allocation8 + $0x68] sm:$0xff]
    %v511 = vld [vmem:[#allocation8 + $0x70] sm:$0xff]
    %v512 = vld [vmem:[#allocation8 + $0x78] sm:$0xff]
    %v529 = vunpack.c.l.b16 %v497
    %v530 = vunpack.c.h.b16 %v497
    %v531 = vunpack.c.l.b16 %v498
    %v532 = vunpack.c.h.b16 %v498
    %v533 = vunpack.c.l.b16 %v499
    %v534 = vunpack.c.h.b16 %v499
    %v535 = vunpack.c.l.b16 %v500
    %v536 = vunpack.c.h.b16 %v500
    %v537 = vunpack.c.l.b16 %v501
    %v538 = vunpack.c.h.b16 %v501
    %v539 = vunpack.c.l.b16 %v502
    %v540 = vunpack.c.h.b16 %v502
    %v541 = vunpack.c.l.b16 %v503
    %v542 = vunpack.c.h.b16 %v503
    %v543 = vunpack.c.l.b16 %v504
    %v544 = vunpack.c.h.b16 %v504
    %v545 = vunpack.c.l.b16 %v505
    %v546 = vunpack.c.h.b16 %v505
    %v547 = vunpack.c.l.b16 %v506
    %v548 = vunpack.c.h.b16 %v506
    %v549 = vunpack.c.l.b16 %v507
    %v550 = vunpack.c.h.b16 %v507
    %v551 = vunpack.c.l.b16 %v508
    %v552 = vunpack.c.h.b16 %v508
    %v553 = vunpack.c.l.b16 %v509
    %v554 = vunpack.c.h.b16 %v509
    %v555 = vunpack.c.l.b16 %v510
    %v556 = vunpack.c.h.b16 %v510
    %v557 = vunpack.c.l.b16 %v511
    %v558 = vunpack.c.h.b16 %v511
    %v559 = vunpack.c.l.b16 %v512
    %v560 = vunpack.c.h.b16 %v512
    %v561 = vpack.c.b16 %v531, %v529
    %v562 = vpack.c.b16 %v532, %v530
    %v563 = vpack.c.b16 %v535, %v533
    %v564 = vpack.c.b16 %v536, %v534
    %v565 = vpack.c.b16 %v539, %v537
    %v566 = vpack.c.b16 %v540, %v538
    %v567 = vpack.c.b16 %v543, %v541
    %v568 = vpack.c.b16 %v544, %v542
    %v569 = vpack.c.b16 %v547, %v545
    %v570 = vpack.c.b16 %v548, %v546
    %v571 = vpack.c.b16 %v551, %v549
    %v572 = vpack.c.b16 %v552, %v550
    %v573 = vpack.c.b16 %v555, %v553
    %v574 = vpack.c.b16 %v556, %v554
    %v575 = vpack.c.b16 %v559, %v557
    %v576 = vpack.c.b16 %v560, %v558
    %593 = vmatprep.subr.bf16.mxu0 %v576
    %594 = vmatpush1.bf16.msra.mxu0 %v575
    %595 = vmatprep.subr.bf16.mxu0 %v574
    %596 = vmatpush1.bf16.msra.mxu0 %v573
    %597 = vmatprep.subr.bf16.mxu0 %v572
    %598 = vmatpush1.bf16.msra.mxu0 %v571
    %599 = vmatprep.subr.bf16.mxu0 %v570
    %600 = vmatpush1.bf16.msra.mxu0 %v569
    %601 = vmatprep.subr.bf16.mxu0 %v568
    %602 = vmatpush1.bf16.msra.mxu0 %v567
    %603 = vmatprep.subr.bf16.mxu0 %v566
    %604 = vmatpush1.bf16.msra.mxu0 %v565
    %605 = vmatprep.subr.bf16.mxu0 %v564
    %606 = vmatpush1.bf16.msra.mxu0 %v563
    %607 = vmatprep.subr.bf16.mxu0 %v562
    %608 = vmatpush1.bf16.msra.mxu0 %v561
    %609 = vmatprep.subr.bf16.mxu0 0
    %610 = vmatpush2.bf16.msra.mxu0 0
    %611 = vmatprep.subr.bf16.mxu0 0
    %612 = vmatpush2.bf16.msra.mxu0 0
    %613 = vmatprep.subr.bf16.mxu0 0
    %614 = vmatpush2.bf16.msra.mxu0 0
    %615 = vmatprep.subr.bf16.mxu0 0
    %616 = vmatpush2.bf16.msra.mxu0 0
    %617 = vmatprep.subr.bf16.mxu0 0
    %618 = vmatpush2.bf16.msra.mxu0 0
    %619 = vmatprep.subr.bf16.mxu0 0
    %620 = vmatpush2.bf16.msra.mxu0 0
    %621 = vmatprep.subr.bf16.mxu0 0
    %622 = vmatpush2.bf16.msra.mxu0 0
    %623 = vmatprep.subr.bf16.mxu0 0
    %624 = vmatpush2.bf16.msra.mxu0 0
    %625 = vmatprep.mubr.bf16.mxu0 0
    %626 = vmatmul.mubr.bf16.gmra.mxu0 %v496
    %v627 = vpop.f32.mrf.mxu0
    %v628 = vadd.f32 0.0, %v627
    %v629 = vpop.f32.mrf.mxu0
    %v630 = vadd.f32 0.0, %v629
    %v631 = vpop.f32.mrf.mxu0
    %v632 = vadd.f32 0.0, %v631
    %v633 = vpop.f32.mrf.mxu0
    %v634 = vadd.f32 0.0, %v633
    %635 = vdwg.mxu0
    %v636 = vpack.c.bf16 %v634, %v630
    %v637 = vld [vmem:[#allocation10] sm:$0xf]
    %v638 = vld [vmem:[#allocation10 + $0x4] sm:$0xf]
    %v639 = vld [vmem:[#allocation10 + $0x8] sm:$0xf]
    %v640 = vld [vmem:[#allocation10 + $0xc] sm:$0xf]
    %v641 = vld [vmem:[#allocation10 + $0x10] sm:$0xf]
    %v642 = vld [vmem:[#allocation10 + $0x14] sm:$0xf]
    %v643 = vld [vmem:[#allocation10 + $0x18] sm:$0xf]
    %v644 = vld [vmem:[#allocation10 + $0x1c] sm:$0xf]
    %v645 = vld [vmem:[#allocation10 + $0x20] sm:$0xf]
    %v646 = vld [vmem:[#allocation10 + $0x24] sm:$0xf]
    %v647 = vld [vmem:[#allocation10 + $0x28] sm:$0xf]
    %v648 = vld [vmem:[#allocation10 + $0x2c] sm:$0xf]
    %v649 = vld [vmem:[#allocation10 + $0x30] sm:$0xf]
    %v650 = vld [vmem:[#allocation10 + $0x34] sm:$0xf]
    %v651 = vld [vmem:[#allocation10 + $0x38] sm:$0xf]
    %v652 = vld [vmem:[#allocation10 + $0x3c] sm:$0xf]
    %v669 = vunpack.c.l.b16 %v637
    %v670 = vunpack.c.l.b16 %v638
    %v671 = vunpack.c.l.b16 %v639
    %v672 = vunpack.c.l.b16 %v640
    %v673 = vunpack.c.l.b16 %v641
    %v674 = vunpack.c.l.b16 %v642
    %v675 = vunpack.c.l.b16 %v643
    %v676 = vunpack.c.l.b16 %v644
    %v677 = vunpack.c.l.b16 %v645
    %v678 = vunpack.c.l.b16 %v646
    %v679 = vunpack.c.l.b16 %v647
    %v680 = vunpack.c.l.b16 %v648
    %v681 = vunpack.c.l.b16 %v649
    %v682 = vunpack.c.l.b16 %v650
    %v683 = vunpack.c.l.b16 %v651
    %v684 = vunpack.c.l.b16 %v652
    %v685 = vpack.c.b16 %v670, %v669
    %v686 = vpack.c.b16 %v672, %v671
    %v687 = vpack.c.b16 %v674, %v673
    %v688 = vpack.c.b16 %v676, %v675
    %v689 = vpack.c.b16 %v678, %v677
    %v690 = vpack.c.b16 %v680, %v679
    %v691 = vpack.c.b16 %v682, %v681
    %v692 = vpack.c.b16 %v684, %v683
    %701 = vmatprep.subr.bf16.mxu0 0
    %702 = vmatpush1.bf16.msra.mxu0 %v692
    %703 = vmatprep.subr.bf16.mxu0 0
    %704 = vmatpush1.bf16.msra.mxu0 %v691
    %705 = vmatprep.subr.bf16.mxu0 0
    %706 = vmatpush1.bf16.msra.mxu0 %v690
    %707 = vmatprep.subr.bf16.mxu0 0
    %708 = vmatpush1.bf16.msra.mxu0 %v689
    %709 = vmatprep.subr.bf16.mxu0 0
    %710 = vmatpush1.bf16.msra.mxu0 %v688
    %711 = vmatprep.subr.bf16.mxu0 0
    %712 = vmatpush1.bf16.msra.mxu0 %v687
    %713 = vmatprep.subr.bf16.mxu0 0
    %714 = vmatpush1.bf16.msra.mxu0 %v686
    %715 = vmatprep.subr.bf16.mxu0 0
    %716 = vmatpush1.bf16.msra.mxu0 %v685
    %717 = vmatprep.subr.bf16.mxu0 0
    %718 = vmatpush2.bf16.msra.mxu0 0
    %719 = vmatprep.subr.bf16.mxu0 0
    %720 = vmatpush2.bf16.msra.mxu0 0
    %721 = vmatprep.subr.bf16.mxu0 0
    %722 = vmatpush2.bf16.msra.mxu0 0
    %723 = vmatprep.subr.bf16.mxu0 0
    %724 = vmatpush2.bf16.msra.mxu0 0
    %725 = vmatprep.subr.bf16.mxu0 0
    %726 = vmatpush2.bf16.msra.mxu0 0
    %727 = vmatprep.subr.bf16.mxu0 0
    %728 = vmatpush2.bf16.msra.mxu0 0
    %729 = vmatprep.subr.bf16.mxu0 0
    %730 = vmatpush2.bf16.msra.mxu0 0
    %731 = vmatprep.subr.bf16.mxu0 0
    %732 = vmatpush2.bf16.msra.mxu0 0
    %733 = vmatprep.mubr.bf16.mxu0 0
    %734 = vmatmul.mubr.bf16.gmra.mxu0 %v636
    %v735 = vpop.f32.mrf.mxu0
    %v736 = vadd.f32 0.0, %v735
    %v737 = vpop.f32.mrf.mxu0
    %v738 = vpop.f32.mrf.mxu0
    %v739 = vadd.f32 0.0, %v738
    %v740 = vpop.f32.mrf.mxu0
    %741 = vdwg.mxu0
    %v742 = vadd.f32 %v628, %v736
    %v743 = vadd.f32 %v632, %v739
    %v744 = vld [vmem:[%s5] sm:$0x1]
    %v746 = vlaneseq
    %v747 = vshrl.u32 %v746, 7
    %v748 = vsub.s32 0, %v747
    %v749 = vrot.slane %v744, %v748
    %v751 = vadd.f32 %v742, %v749
    %v752 = vadd.f32 %v743, %v749
    %vm753 = vcmp.ge.f32.partialorder %v751, 0.0
    %vm754 = vcmp.ge.f32.partialorder %v752, 0.0
    %v755 = vmul.f32 %v751, 0.01
    %v756 = vmul.f32 %v752, 0.01
    %v757 = vsel %vm753, %v751, %v755
    %v758 = vsel %vm754, %v752, %v756
    %v759 = vpack.c.bf16 %v758, %v757
    %v760 = vld [vmem:[#allocation11] sm:$0xff]
    %v761 = vld [vmem:[#allocation11 + $0x8] sm:$0xff]
    %v762 = vld [vmem:[#allocation11 + $0x10] sm:$0xff]
    %v763 = vld [vmem:[#allocation11 + $0x18] sm:$0xff]
    %v764 = vld [vmem:[#allocation11 + $0x20] sm:$0xff]
    %v765 = vld [vmem:[#allocation11 + $0x28] sm:$0xff]
    %v766 = vld [vmem:[#allocation11 + $0x30] sm:$0xff]
    %v767 = vld [vmem:[#allocation11 + $0x38] sm:$0xff]
    %v768 = vld [vmem:[#allocation11 + $0x40] sm:$0xff]
    %v769 = vld [vmem:[#allocation11 + $0x48] sm:$0xff]
    %v770 = vld [vmem:[#allocation11 + $0x50] sm:$0xff]
    %v771 = vld [vmem:[#allocation11 + $0x58] sm:$0xff]
    %v772 = vld [vmem:[#allocation11 + $0x60] sm:$0xff]
    %v773 = vld [vmem:[#allocation11 + $0x68] sm:$0xff]
    %v774 = vld [vmem:[#allocation11 + $0x70] sm:$0xff]
    %v775 = vld [vmem:[#allocation11 + $0x78] sm:$0xff]
    %v792 = vunpack.c.l.b16 %v760
    %v793 = vunpack.c.h.b16 %v760
    %v794 = vunpack.c.l.b16 %v761
    %v795 = vunpack.c.h.b16 %v761
    %v796 = vunpack.c.l.b16 %v762
    %v797 = vunpack.c.h.b16 %v762
    %v798 = vunpack.c.l.b16 %v763
    %v799 = vunpack.c.h.b16 %v763
    %v800 = vunpack.c.l.b16 %v764
    %v801 = vunpack.c.h.b16 %v764
    %v802 = vunpack.c.l.b16 %v765
    %v803 = vunpack.c.h.b16 %v765
    %v804 = vunpack.c.l.b16 %v766
    %v805 = vunpack.c.h.b16 %v766
    %v806 = vunpack.c.l.b16 %v767
    %v807 = vunpack.c.h.b16 %v767
    %v808 = vunpack.c.l.b16 %v768
    %v809 = vunpack.c.h.b16 %v768
    %v810 = vunpack.c.l.b16 %v769
    %v811 = vunpack.c.h.b16 %v769
    %v812 = vunpack.c.l.b16 %v770
    %v813 = vunpack.c.h.b16 %v770
    %v814 = vunpack.c.l.b16 %v771
    %v815 = vunpack.c.h.b16 %v771
    %v816 = vunpack.c.l.b16 %v772
    %v817 = vunpack.c.h.b16 %v772
    %v818 = vunpack.c.l.b16 %v773
    %v819 = vunpack.c.h.b16 %v773
    %v820 = vunpack.c.l.b16 %v774
    %v821 = vunpack.c.h.b16 %v774
    %v822 = vunpack.c.l.b16 %v775
    %v823 = vunpack.c.h.b16 %v775
    %v824 = vpack.c.b16 %v794, %v792
    %v825 = vpack.c.b16 %v795, %v793
    %v826 = vpack.c.b16 %v798, %v796
    %v827 = vpack.c.b16 %v799, %v797
    %v828 = vpack.c.b16 %v802, %v800
    %v829 = vpack.c.b16 %v803, %v801
    %v830 = vpack.c.b16 %v806, %v804
    %v831 = vpack.c.b16 %v807, %v805
    %v832 = vpack.c.b16 %v810, %v808
    %v833 = vpack.c.b16 %v811, %v809
    %v834 = vpack.c.b16 %v814, %v812
    %v835 = vpack.c.b16 %v815, %v813
    %v836 = vpack.c.b16 %v818, %v816
    %v837 = vpack.c.b16 %v819, %v817
    %v838 = vpack.c.b16 %v822, %v820
    %v839 = vpack.c.b16 %v823, %v821
    %856 = vmatprep.subr.bf16.mxu0 %v839
    %857 = vmatpush1.bf16.msra.mxu0 %v838
    %858 = vmatprep.subr.bf16.mxu0 %v837
    %859 = vmatpush1.bf16.msra.mxu0 %v836
    %860 = vmatprep.subr.bf16.mxu0 %v835
    %861 = vmatpush1.bf16.msra.mxu0 %v834
    %862 = vmatprep.subr.bf16.mxu0 %v833
    %863 = vmatpush1.bf16.msra.mxu0 %v832
    %864 = vmatprep.subr.bf16.mxu0 %v831
    %865 = vmatpush1.bf16.msra.mxu0 %v830
    %866 = vmatprep.subr.bf16.mxu0 %v829
    %867 = vmatpush1.bf16.msra.mxu0 %v828
    %868 = vmatprep.subr.bf16.mxu0 %v827
    %869 = vmatpush1.bf16.msra.mxu0 %v826
    %870 = vmatprep.subr.bf16.mxu0 %v825
    %871 = vmatpush1.bf16.msra.mxu0 %v824
    %872 = vmatprep.subr.bf16.mxu0 0
    %873 = vmatpush2.bf16.msra.mxu0 0
    %874 = vmatprep.subr.bf16.mxu0 0
    %875 = vmatpush2.bf16.msra.mxu0 0
    %876 = vmatprep.subr.bf16.mxu0 0
    %877 = vmatpush2.bf16.msra.mxu0 0
    %878 = vmatprep.subr.bf16.mxu0 0
    %879 = vmatpush2.bf16.msra.mxu0 0
    %880 = vmatprep.subr.bf16.mxu0 0
    %881 = vmatpush2.bf16.msra.mxu0 0
    %882 = vmatprep.subr.bf16.mxu0 0
    %883 = vmatpush2.bf16.msra.mxu0 0
    %884 = vmatprep.subr.bf16.mxu0 0
    %885 = vmatpush2.bf16.msra.mxu0 0
    %886 = vmatprep.subr.bf16.mxu0 0
    %887 = vmatpush2.bf16.msra.mxu0 0
    %888 = vmatprep.mubr.bf16.mxu0 0
    %889 = vmatmul.mubr.bf16.gmra.mxu0 %v759
    %v890 = vpop.f32.mrf.mxu0
    %v891 = vadd.f32 0.0, %v890
    %v892 = vpop.f32.mrf.mxu0
    %v893 = vadd.f32 0.0, %v892
    %v894 = vpop.f32.mrf.mxu0
    %v895 = vadd.f32 0.0, %v894
    %v896 = vpop.f32.mrf.mxu0
    %v897 = vadd.f32 0.0, %v896
    %898 = vdwg.mxu0
    %v899 = vpack.c.bf16 %v897, %v893
    %v900 = vld [vmem:[#allocation13] sm:$0xf]
    %v901 = vld [vmem:[#allocation13 + $0x4] sm:$0xf]
    %v902 = vld [vmem:[#allocation13 + $0x8] sm:$0xf]
    %v903 = vld [vmem:[#allocation13 + $0xc] sm:$0xf]
    %v904 = vld [vmem:[#allocation13 + $0x10] sm:$0xf]
    %v905 = vld [vmem:[#allocation13 + $0x14] sm:$0xf]
    %v906 = vld [vmem:[#allocation13 + $0x18] sm:$0xf]
    %v907 = vld [vmem:[#allocation13 + $0x1c] sm:$0xf]
    %v908 = vld [vmem:[#allocation13 + $0x20] sm:$0xf]
    %v909 = vld [vmem:[#allocation13 + $0x24] sm:$0xf]
    %v910 = vld [vmem:[#allocation13 + $0x28] sm:$0xf]
    %v911 = vld [vmem:[#allocation13 + $0x2c] sm:$0xf]
    %v912 = vld [vmem:[#allocation13 + $0x30] sm:$0xf]
    %v913 = vld [vmem:[#allocation13 + $0x34] sm:$0xf]
    %v914 = vld [vmem:[#allocation13 + $0x38] sm:$0xf]
    %v915 = vld [vmem:[#allocation13 + $0x3c] sm:$0xf]
    %v932 = vunpack.c.l.b16 %v900
    %v933 = vunpack.c.l.b16 %v901
    %v934 = vunpack.c.l.b16 %v902
    %v935 = vunpack.c.l.b16 %v903
    %v936 = vunpack.c.l.b16 %v904
    %v937 = vunpack.c.l.b16 %v905
    %v938 = vunpack.c.l.b16 %v906
    %v939 = vunpack.c.l.b16 %v907
    %v940 = vunpack.c.l.b16 %v908
    %v941 = vunpack.c.l.b16 %v909
    %v942 = vunpack.c.l.b16 %v910
    %v943 = vunpack.c.l.b16 %v911
    %v944 = vunpack.c.l.b16 %v912
    %v945 = vunpack.c.l.b16 %v913
    %v946 = vunpack.c.l.b16 %v914
    %v947 = vunpack.c.l.b16 %v915
    %v948 = vpack.c.b16 %v933, %v932
    %v949 = vpack.c.b16 %v935, %v934
    %v950 = vpack.c.b16 %v937, %v936
    %v951 = vpack.c.b16 %v939, %v938
    %v952 = vpack.c.b16 %v941, %v940
    %v953 = vpack.c.b16 %v943, %v942
    %v954 = vpack.c.b16 %v945, %v944
    %v955 = vpack.c.b16 %v947, %v946
    %964 = vmatprep.subr.bf16.mxu0 0
    %965 = vmatpush1.bf16.msra.mxu0 %v955
    %966 = vmatprep.subr.bf16.mxu0 0
    %967 = vmatpush1.bf16.msra.mxu0 %v954
    %968 = vmatprep.subr.bf16.mxu0 0
    %969 = vmatpush1.bf16.msra.mxu0 %v953
    %970 = vmatprep.subr.bf16.mxu0 0
    %971 = vmatpush1.bf16.msra.mxu0 %v952
    %972 = vmatprep.subr.bf16.mxu0 0
    %973 = vmatpush1.bf16.msra.mxu0 %v951
    %974 = vmatprep.subr.bf16.mxu0 0
    %975 = vmatpush1.bf16.msra.mxu0 %v950
    %976 = vmatprep.subr.bf16.mxu0 0
    %977 = vmatpush1.bf16.msra.mxu0 %v949
    %978 = vmatprep.subr.bf16.mxu0 0
    %979 = vmatpush1.bf16.msra.mxu0 %v948
    %980 = vmatprep.subr.bf16.mxu0 0
    %981 = vmatpush2.bf16.msra.mxu0 0
    %982 = vmatprep.subr.bf16.mxu0 0
    %983 = vmatpush2.bf16.msra.mxu0 0
    %984 = vmatprep.subr.bf16.mxu0 0
    %985 = vmatpush2.bf16.msra.mxu0 0
    %986 = vmatprep.subr.bf16.mxu0 0
    %987 = vmatpush2.bf16.msra.mxu0 0
    %988 = vmatprep.subr.bf16.mxu0 0
    %989 = vmatpush2.bf16.msra.mxu0 0
    %990 = vmatprep.subr.bf16.mxu0 0
    %991 = vmatpush2.bf16.msra.mxu0 0
    %992 = vmatprep.subr.bf16.mxu0 0
    %993 = vmatpush2.bf16.msra.mxu0 0
    %994 = vmatprep.subr.bf16.mxu0 0
    %995 = vmatpush2.bf16.msra.mxu0 0
    %996 = vmatprep.mubr.bf16.mxu0 0
    %997 = vmatmul.mubr.bf16.gmra.mxu0 %v899
    %v998 = vpop.f32.mrf.mxu0
    %v999 = vadd.f32 0.0, %v998
    %v1000 = vpop.f32.mrf.mxu0
    %v1001 = vpop.f32.mrf.mxu0
    %v1002 = vadd.f32 0.0, %v1001
    %v1003 = vpop.f32.mrf.mxu0
    %1004 = vdwg.mxu0
    %v1005 = vadd.f32 %v891, %v999
    %v1006 = vadd.f32 %v895, %v1002
    %v1007 = vld [vmem:[%s8] sm:$0x1]
    %v1009 = vlaneseq
    %v1010 = vshrl.u32 %v1009, 7
    %v1011 = vsub.s32 0, %v1010
    %v1012 = vrot.slane %v1007, %v1011
    %v1014 = vadd.f32 %v1005, %v1012
    %v1015 = vadd.f32 %v1006, %v1012
    %1016 = vst [vmem:[#allocation14] sm:$0xff] %v1014
    %1017 = vst [vmem:[#allocation14 + $0x8] sm:$0xff] %v1015
    // Predicated region
    $region70: #{tpu_custom_call.1} parent=1 // pred_check
      _
    $region71: #{tpu_custom_call.1} parent=1 // pred_check_branch
      %1019 = sbr.rel (0) target = $region73
    $region72: #{tpu_custom_call.1} parent=1 // pred_region
      %s1021 = ssub.s32 256, 256
      %1022 = vsyncadd [#allocation4], %s1021
      %s1023 = sshll.u32 [#allocation14], 4
      %s1024 = int_to_ptr.vmem [resolvable:$true] %s1023
      %1029 = dma.vmem_to_hbm [thread:$0]  %s1024, 256, %s10, [#allocation4], 128, 128, 8
    $region73: #{tpu_custom_call.1} parent=1 // pred_fallthru
      _
    // Predicated region
    $region74: #{tpu_custom_call.1} parent=1 // pred_check
      _
    $region75: #{tpu_custom_call.1} parent=1 // pred_check_branch
      %1031 = sbr.rel (0) target = $region77
    $region76: #{tpu_custom_call.1} parent=1 // pred_region
      %1032 = dma.done [#allocation4], 256
    $region77: #{tpu_custom_call.1} parent=1 // pred_fallthru
      _
    %1033 = vsyncpa [#allocation3], 1
    %1034 = vsyncpa [#allocation6], 1
    %1035 = vsyncpa [#allocation9], 1
    %1036 = vsyncpa [#allocation12], 1
    %1037 = vsyncpa [#allocation4], 1

// kernel: tpu_custom_call.1
$region0: #{tpu_custom_call.1}
  #allocation0 [shape = 'u32[]', space=smem, size = 0x4, offset = 0x4, fixed_abs, tag = 'smem constant byte address 0x4 - core index']
  #allocation1 [shape = 'u32[144,128]{1,0:T(1,128)}', space=vmem, size = 0x12000, scoped, tag = 'internal scratch']
  %s0 = inlined_call_operand.hbm [shape: f32[16,256], index: 0, kind: input, shape index: {}]
  %s1 = inlined_call_operand.hbm [shape: bf16[256,256], index: 1, kind: input, shape index: {}]
  %s2 = inlined_call_operand.vmem [shape: f32[1,128], index: 2, kind: input, shape index: {}]
  %s3 = inlined_call_operand.hbm [shape: bf16[128,128], index: 3, kind: input, shape index: {}]
  %s4 = inlined_call_operand.hbm [shape: bf16[128,256], index: 4, kind: input, shape index: {}]
  %s5 = inlined_call_operand.vmem [shape: f32[1,128], index: 5, kind: input, shape index: {}]
  %s6 = inlined_call_operand.hbm [shape: bf16[128,128], index: 6, kind: input, shape index: {}]
  %s7 = inlined_call_operand.hbm [shape: bf16[128,256], index: 7, kind: input, shape index: {}]
  %s8 = inlined_call_operand.vmem [shape: f32[1,128], index: 8, kind: input, shape index: {}]
  %s9 = inlined_call_operand.hbm [shape: bf16[128,128], index: 9, kind: input, shape index: {}]
  %s10 = inlined_call_operand.hbm [shape: f32[16,128], index: 10, kind: output, shape index: {}]
  %s11 = sld [smem:[#allocation0]]
  $region78: #{tpu_custom_call.1} parent=0
    _
  %s13 = ssub.s32 1, %s11
  %s14 = scalar_select 0, %s13, %s11
  $region1: #{tpu_custom_call.1} parent=0
    #allocation2 [shape = 'u8[16384]{0}', space=vmem, size = 0x4000, scoped, tag = 'input window, operand 0, single buffered']
    #allocation3 [shape = 's32[1]{0}', space=sflag, size = 0x4, scoped, tag = 'scoped memory for tpu_custom_call.1']
    #allocation4 [shape = 's32[1]{0}', space=sflag, size = 0x4, scoped, tag = 'scoped memory for tpu_custom_call.1']
    #allocation5 [shape = 'u8[131072]{0}', space=vmem, size = 0x20000, scoped, tag = 'input window, operand 1, single buffered']
    #allocation6 [shape = 's32[1]{0}', space=sflag, size = 0x4, scoped, tag = 'scoped memory for tpu_custom_call.1']
    #allocation7 [shape = 'u8[32768]{0}', space=vmem, size = 0x8000, scoped, tag = 'input window, operand 3, single buffered']
    #allocation8 [shape = 'u8[65536]{0}', space=vmem, size = 0x10000, scoped, tag = 'input window, operand 4, single buffered']
    #allocation9 [shape = 's32[1]{0}', space=sflag, size = 0x4, scoped, tag = 'scoped memory for tpu_custom_call.1']
    #allocation10 [shape = 'u8[32768]{0}', space=vmem, size = 0x8000, scoped, tag = 'input window, operand 6, single buffered']
    #allocation11 [shape = 'u8[65536]{0}', space=vmem, size = 0x10000, scoped, tag = 'input window, operand 7, single buffered']
    #allocation12 [shape = 's32[1]{0}', space=sflag, size = 0x4, scoped, tag = 'scoped memory for tpu_custom_call.1']
    #allocation13 [shape = 'u8[32768]{0}', space=vmem, size = 0x8000, scoped, tag = 'input window, operand 9, single buffered']
    #allocation14 [shape = 'u8[8192]{0}', space=vmem, size = 0x2000, scoped, tag = 'output window, operand 0, single buffered']
    %15 = vsyncpa [#allocation3], 0
    %16 = vsyncpa [#allocation6], 0
    %17 = vsyncpa [#allocation9], 0
    %18 = vsyncpa [#allocation12], 0
    %19 = vsyncpa [#allocation4], 0
    // Predicated region
    $region2: #{tpu_custom_call.1} parent=1 // pred_check
      _
    $region3: #{tpu_custom_call.1} parent=1 // pred_check_branch
      %21 = sbr.rel (0) target = $region5
    $region4: #{tpu_custom_call.1} parent=1 // pred_region
      %s23 = ssub.s32 512, 512
      %24 = vsyncadd [#allocation3], %s23
      %s25 = sshll.u32 [#allocation2], 4
      %s26 = int_to_ptr.vmem [resolvable:$true] %s25
      %31 = dma.hbm_to_vmem [thread:$0]  %s0, 512, %s26, [#allocation3], 256, 256, 16
    $region5: #{tpu_custom_call.1} parent=1 // pred_fallthru
      _
    // Predicated region
    $region6: #{tpu_custom_call.1} parent=1 // pred_check
      _
    $region7: #{tpu_custom_call.1} parent=1 // pred_check_branch
      %33 = sbr.rel (0) target = $region9
    $region8: #{tpu_custom_call.1} parent=1 // pred_region
      %s35 = ssub.s32 4096, 4096
      %36 = vsyncadd [#allocation6], %s35
      %s37 = sshll.u32 [#allocation5], 4
      %s38 = int_to_ptr.vmem [resolvable:$true] %s37
      %43 = dma.hbm_to_vmem [thread:$0]  %s1, 4096, %s38, [#allocation6], 128, 128, 8
    $region9: #{tpu_custom_call.1} parent=1 // pred_fallthru
      _
    // Predicated region
    $region10: #{tpu_custom_call.1} parent=1 // pred_check
      _
    $region11: #{tpu_custom_call.1} parent=1 // pred_check_branch
      %45 = sbr.rel (0) target = $region13
    $region12: #{tpu_custom_call.1} parent=1 // pred_region
      _
    $region13: #{tpu_custom_call.1} parent=1 // pred_fallthru
      _
    // Predicated region
    $region14: #{tpu_custom_call.1} parent=1 // pred_check
      _
    $region15: #{tpu_custom_call.1} parent=1 // pred_check_branch
      %47 = sbr.rel (0) target = $region17
    $region16: #{tpu_custom_call.1} parent=1 // pred_region
      %s49 = ssub.s32 1024, 1024
      %50 = vsyncadd [#allocation6], %s49
      %s51 = sshll.u32 [#allocation7], 4
      %s52 = int_to_ptr.vmem [resolvable:$true] %s51
      %57 = dma.hbm_to_vmem [thread:$0]  %s3, 1024, %s52, [#allocation6], 64, 64, 4
    $region17: #{tpu_custom_call.1} parent=1 // pred_fallthru
      _
    // Predicated region
    $region18: #{tpu_custom_call.1} parent=1 // pred_check
      _
    $region19: #{tpu_custom_call.1} parent=1 // pred_check_branch
      %59 = sbr.rel (0) target = $region21
    $region20: #{tpu_custom_call.1} parent=1 // pred_region
      %s61 = ssub.s32 2048, 2048
      %62 = vsyncadd [#allocation9], %s61
      %s63 = sshll.u32 [#allocation8], 4
      %s64 = int_to_ptr.vmem [resolvable:$true] %s63
      %69 = dma.hbm_to_vmem [thread:$0]  %s4, 2048, %s64, [#allocation9], 128, 128, 8
    $region21: #{tpu_custom_call.1} parent=1 // pred_fallthru
      _
    // Predicated region
    $region22: #{tpu_custom_call.1} parent=1 // pred_check
      _
    $region23: #{tpu_custom_call.1} parent=1 // pred_check_branch
      %71 = sbr.rel (0) target = $region25
    $region24: #{tpu_custom_call.1} parent=1 // pred_region
      _
    $region25: #{tpu_custom_call.1} parent=1 // pred_fallthru
      _
    // Predicated region
    $region26: #{tpu_custom_call.1} parent=1 // pred_check
      _
    $region27: #{tpu_custom_call.1} parent=1 // pred_check_branch
      %73 = sbr.rel (0) target = $region29
    $region28: #{tpu_custom_call.1} parent=1 // pred_region
      %s75 = ssub.s32 1024, 1024
      %76 = vsyncadd [#allocation9], %s75
      %s77 = sshll.u32 [#allocation10], 4
      %s78 = int_to_ptr.vmem [resolvable:$true] %s77
      %83 = dma.hbm_to_vmem [thread:$0]  %s6, 1024, %s78, [#allocation9], 64, 64, 4
    $region29: #{tpu_custom_call.1} parent=1 // pred_fallthru
      _
    // Predicated region
    $region30: #{tpu_custom_call.1} parent=1 // pred_check
      _
    $region31: #{tpu_custom_call.1} parent=1 // pred_check_branch
      %85 = sbr.rel (0) target = $region33
    $region32: #{tpu_custom_call.1} parent=1 // pred_region
      %s87 = ssub.s32 2048, 2048
      %88 = vsyncadd [#allocation12], %s87
      %s89 = sshll.u32 [#allocation11], 4
      %s90 = int_to_ptr.vmem [resolvable:$true] %s89
      %95 = dma.hbm_to_vmem [thread:$0]  %s7, 2048, %s90, [#allocation12], 128, 128, 8
    $region33: #{tpu_custom_call.1} parent=1 // pred_fallthru
      _
    // Predicated region
    $region34: #{tpu_custom_call.1} parent=1 // pred_check
      _
    $region35: #{tpu_custom_call.1} parent=1 // pred_check_branch
      %97 = sbr.rel (0) target = $region37
    $region36: #{tpu_custom_call.1} parent=1 // pred_region
      _
    $region37: #{tpu_custom_call.1} parent=1 // pred_fallthru
      _
    // Predicated region
    $region38: #{tpu_custom_call.1} parent=1 // pred_check
      _
    $region39: #{tpu_custom_call.1} parent=1 // pred_check_branch
      %99 = sbr.rel (0) target = $region41
    $region40: #{tpu_custom_call.1} parent=1 // pred_region
      %s101 = ssub.s32 1024, 1024
      %102 = vsyncadd [#allocation12], %s101
      %s103 = sshll.u32 [#allocation13], 4
      %s104 = int_to_ptr.vmem [resolvable:$true] %s103
      %109 = dma.hbm_to_vmem [thread:$0]  %s9, 1024, %s104, [#allocation12], 64, 64, 4
    $region41: #{tpu_custom_call.1} parent=1 // pred_fallthru
      _
    // Predicated region
    $region42: #{tpu_custom_call.1} parent=1 // pred_check
      _
    $region43: #{tpu_custom_call.1} parent=1 // pred_check_branch
      %111 = sbr.rel (0) target = $region45
    $region44: #{tpu_custom_call.1} parent=1 // pred_region
      %112 = dma.done [#allocation3], 512
    $region45: #{tpu_custom_call.1} parent=1 // pred_fallthru
      _
    // Predicated region
    $region46: #{tpu_custom_call.1} parent=1 // pred_check
      _
    $region47: #{tpu_custom_call.1} parent=1 // pred_check_branch
      %114 = sbr.rel (0) target = $region49
    $region48: #{tpu_custom_call.1} parent=1 // pred_region
      %115 = dma.done [#allocation6], 4096
    $region49: #{tpu_custom_call.1} parent=1 // pred_fallthru
      _
    // Predicated region
    $region50: #{tpu_custom_call.1} parent=1 // pred_check
      _
    $region51: #{tpu_custom_call.1} parent=1 // pred_check_branch
      %117 = sbr.rel (0) target = $region53
    $region52: #{tpu_custom_call.1} parent=1 // pred_region
      %118 = dma.done [#allocation6], 1024
    $region53: #{tpu_custom_call.1} parent=1 // pred_fallthru
      _
    // Predicated region
    $region54: #{tpu_custom_call.1} parent=1 // pred_check
      _
    $region55: #{tpu_custom_call.1} parent=1 // pred_check_branch
      %120 = sbr.rel (0) target = $region57
    $region56: #{tpu_custom_call.1} parent=1 // pred_region
      %121 = dma.done [#allocation9], 2048
    $region57: #{tpu_custom_call.1} parent=1 // pred_fallthru
      _
    // Predicated region
    $region58: #{tpu_custom_call.1} parent=1 // pred_check
      _
    $region59: #{tpu_custom_call.1} parent=1 // pred_check_branch
      %123 = sbr.rel (0) target = $region61
    $region60: #{tpu_custom_call.1} parent=1 // pred_region
      %124 = dma.done [#allocation9], 1024
    $region61: #{tpu_custom_call.1} parent=1 // pred_fallthru
      _
    // Predicated region
    $region62: #{tpu_custom_call.1} parent=1 // pred_check
      _
    $region63: #{tpu_custom_call.1} parent=1 // pred_check_branch
      %126 = sbr.rel (0) target = $region65
    $region64: #{tpu_custom_call.1} parent=1 // pred_region
      %127 = dma.done [#allocation12], 2048
    $region65: #{tpu_custom_call.1} parent=1 // pred_fallthru
      _
    // Predicated region
    $region66: #{tpu_custom_call.1} parent=1 // pred_check
      _
    $region67: #{tpu_custom_call.1} parent=1 // pred_check_branch
      %129 = sbr.rel (0) target = $region69
    $region68: #{tpu_custom_call.1} parent=1 // pred_region
      %130 = dma.done [#allocation12], 1024
    $region69: #{tpu_custom_call.1} parent=1 // pred_fallthru
      _
    %v132 = vld [vmem:[#allocation2] sm:$0xff]
    %v133 = vld [vmem:[#allocation2 + $0x8] sm:$0xff]
    %v134 = vld [vmem:[#allocation2 + $0x10] sm:$0xff]
    %v135 = vld [vmem:[#allocation2 + $0x18] sm:$0xff]
    %v136 = vpack.c.bf16 %v134, %v132
    %v137 = vpack.c.bf16 %v135, %v133
    %v138 = vld [vmem:[#allocation5] sm:$0xff]
    %v139 = vld [vmem:[#allocation5 + $0x8] sm:$0xff]
    %v140 = vld [vmem:[#allocation5 + $0x10] sm:$0xff]
    %v141 = vld [vmem:[#allocation5 + $0x18] sm:$0xff]
    %v142 = vld [vmem:[#allocation5 + $0x20] sm:$0xff]
    %v143 = vld [vmem:[#allocation5 + $0x28] sm:$0xff]
    %v144 = vld [vmem:[#allocation5 + $0x30] sm:$0xff]
    %v145 = vld [vmem:[#allocation5 + $0x38] sm:$0xff]
    %v146 = vld [vmem:[#allocation5 + $0x40] sm:$0xff]
    %v147 = vld [vmem:[#allocation5 + $0x48] sm:$0xff]
    %v148 = vld [vmem:[#allocation5 + $0x50] sm:$0xff]
    %v149 = vld [vmem:[#allocation5 + $0x58] sm:$0xff]
    %v150 = vld [vmem:[#allocation5 + $0x60] sm:$0xff]
    %v151 = vld [vmem:[#allocation5 + $0x68] sm:$0xff]
    %v152 = vld [vmem:[#allocation5 + $0x70] sm:$0xff]
    %v153 = vld [vmem:[#allocation5 + $0x78] sm:$0xff]
    %v154 = vld [vmem:[#allocation5 + $0x80] sm:$0xff]
    %v155 = vld [vmem:[#allocation5 + $0x88] sm:$0xff]
    %v156 = vld [vmem:[#allocation5 + $0x90] sm:$0xff]
    %v157 = vld [vmem:[#allocation5 + $0x98] sm:$0xff]
    %v158 = vld [vmem:[#allocation5 + $0xa0] sm:$0xff]
    %v159 = vld [vmem:[#allocation5 + $0xa8] sm:$0xff]
    %v160 = vld [vmem:[#allocation5 + $0xb0] sm:$0xff]
    %v161 = vld [vmem:[#allocation5 + $0xb8] sm:$0xff]
    %v162 = vld [vmem:[#allocation5 + $0xc0] sm:$0xff]
    %v163 = vld [vmem:[#allocation5 + $0xc8] sm:$0xff]
    %v164 = vld [vmem:[#allocation5 + $0xd0] sm:$0xff]
    %v165 = vld [vmem:[#allocation5 + $0xd8] sm:$0xff]
    %v166 = vld [vmem:[#allocation5 + $0xe0] sm:$0xff]
    %v167 = vld [vmem:[#allocation5 + $0xe8] sm:$0xff]
    %v168 = vld [vmem:[#allocation5 + $0xf0] sm:$0xff]
    %v169 = vld [vmem:[#allocation5 + $0xf8] sm:$0xff]
    %v202 = vunpack.c.l.b16 %v138
    %v203 = vunpack.c.h.b16 %v138
    %v204 = vunpack.c.l.b16 %v139
    %v205 = vunpack.c.h.b16 %v139
    %v206 = vunpack.c.l.b16 %v140
    %v207 = vunpack.c.h.b16 %v140
    %v208 = vunpack.c.l.b16 %v141
    %v209 = vunpack.c.h.b16 %v141
    %v210 = vunpack.c.l.b16 %v142
    %v211 = vunpack.c.h.b16 %v142
    %v212 = vunpack.c.l.b16 %v143
    %v213 = vunpack.c.h.b16 %v143
    %v214 = vunpack.c.l.b16 %v144
    %v215 = vunpack.c.h.b16 %v144
    %v216 = vunpack.c.l.b16 %v145
    %v217 = vunpack.c.h.b16 %v145
    %v218 = vunpack.c.l.b16 %v146
    %v219 = vunpack.c.h.b16 %v146
    %v220 = vunpack.c.l.b16 %v147
    %v221 = vunpack.c.h.b16 %v147
    %v222 = vunpack.c.l.b16 %v148
    %v223 = vunpack.c.h.b16 %v148
    %v224 = vunpack.c.l.b16 %v149
    %v225 = vunpack.c.h.b16 %v149
    %v226 = vunpack.c.l.b16 %v150
    %v227 = vunpack.c.h.b16 %v150
    %v228 = vunpack.c.l.b16 %v151
    %v229 = vunpack.c.h.b16 %v151
    %v230 = vunpack.c.l.b16 %v152
    %v231 = vunpack.c.h.b16 %v152
    %v232 = vunpack.c.l.b16 %v153
    %v233 = vunpack.c.h.b16 %v153
    %v234 = vunpack.c.l.b16 %v154
    %v235 = vunpack.c.h.b16 %v154
    %v236 = vunpack.c.l.b16 %v155
    %v237 = vunpack.c.h.b16 %v155
    %v238 = vunpack.c.l.b16 %v156
    %v239 = vunpack.c.h.b16 %v156
    %v240 = vunpack.c.l.b16 %v157
    %v241 = vunpack.c.h.b16 %v157
    %v242 = vunpack.c.l.b16 %v158
    %v243 = vunpack.c.h.b16 %v158
    %v244 = vunpack.c.l.b16 %v159
    %v245 = vunpack.c.h.b16 %v159
    %v246 = vunpack.c.l.b16 %v160
    %v247 = vunpack.c.h.b16 %v160
    %v248 = vunpack.c.l.b16 %v161
    %v249 = vunpack.c.h.b16 %v161
    %v250 = vunpack.c.l.b16 %v162
    %v251 = vunpack.c.h.b16 %v162
    %v252 = vunpack.c.l.b16 %v163
    %v253 = vunpack.c.h.b16 %v163
    %v254 = vunpack.c.l.b16 %v164
    %v255 = vunpack.c.h.b16 %v164
    %v256 = vunpack.c.l.b16 %v165
    %v257 = vunpack.c.h.b16 %v165
    %v258 = vunpack.c.l.b16 %v166
    %v259 = vunpack.c.h.b16 %v166
    %v260 = vunpack.c.l.b16 %v167
    %v261 = vunpack.c.h.b16 %v167
    %v262 = vunpack.c.l.b16 %v168
    %v263 = vunpack.c.h.b16 %v168
    %v264 = vunpack.c.l.b16 %v169
    %v265 = vunpack.c.h.b16 %v169
    %v266 = vpack.c.b16 %v204, %v202
    %v267 = vpack.c.b16 %v205, %v203
    %v268 = vpack.c.b16 %v208, %v206
    %v269 = vpack.c.b16 %v209, %v207
    %v270 = vpack.c.b16 %v212, %v210
    %v271 = vpack.c.b16 %v213, %v211
    %v272 = vpack.c.b16 %v216, %v214
    %v273 = vpack.c.b16 %v217, %v215
    %v274 = vpack.c.b16 %v220, %v218
    %v275 = vpack.c.b16 %v221, %v219
    %v276 = vpack.c.b16 %v224, %v222
    %v277 = vpack.c.b16 %v225, %v223
    %v278 = vpack.c.b16 %v228, %v226
    %v279 = vpack.c.b16 %v229, %v227
    %v280 = vpack.c.b16 %v232, %v230
    %v281 = vpack.c.b16 %v233, %v231
    %v282 = vpack.c.b16 %v236, %v234
    %v283 = vpack.c.b16 %v237, %v235
    %v284 = vpack.c.b16 %v240, %v238
    %v285 = vpack.c.b16 %v241, %v239
    %v286 = vpack.c.b16 %v244, %v242
    %v287 = vpack.c.b16 %v245, %v243
    %v288 = vpack.c.b16 %v248, %v246
    %v289 = vpack.c.b16 %v249, %v247
    %v290 = vpack.c.b16 %v252, %v250
    %v291 = vpack.c.b16 %v253, %v251
    %v292 = vpack.c.b16 %v256, %v254
    %v293 = vpack.c.b16 %v257, %v255
    %v294 = vpack.c.b16 %v260, %v258
    %v295 = vpack.c.b16 %v261, %v259
    %v296 = vpack.c.b16 %v264, %v262
    %v297 = vpack.c.b16 %v265, %v263
    %330 = vmatprep.subr.bf16.mxu0 %v281
    %331 = vmatpush1.bf16.msra.mxu0 %v280
    %332 = vmatprep.subr.bf16.mxu0 %v279
    %333 = vmatpush1.bf16.msra.mxu0 %v278
    %334 = vmatprep.subr.bf16.mxu0 %v277
    %335 = vmatpush1.bf16.msra.mxu0 %v276
    %336 = vmatprep.subr.bf16.mxu0 %v275
    %337 = vmatpush1.bf16.msra.mxu0 %v274
    %338 = vmatprep.subr.bf16.mxu0 %v273
    %339 = vmatpush1.bf16.msra.mxu0 %v272
    %340 = vmatprep.subr.bf16.mxu0 %v271
    %341 = vmatpush1.bf16.msra.mxu0 %v270
    %342 = vmatprep.subr.bf16.mxu0 %v269
    %343 = vmatpush1.bf16.msra.mxu0 %v268
    %344 = vmatprep.subr.bf16.mxu0 %v267
    %345 = vmatpush1.bf16.msra.mxu0 %v266
    %346 = vmatprep.subr.bf16.mxu0 %v297
    %347 = vmatpush2.bf16.msra.mxu0 %v296
    %348 = vmatprep.subr.bf16.mxu0 %v295
    %349 = vmatpush2.bf16.msra.mxu0 %v294
    %350 = vmatprep.subr.bf16.mxu0 %v293
    %351 = vmatpush2.bf16.msra.mxu0 %v292
    %352 = vmatprep.subr.bf16.mxu0 %v291
    %353 = vmatpush2.bf16.msra.mxu0 %v290
    %354 = vmatprep.subr.bf16.mxu0 %v289
    %355 = vmatpush2.bf16.msra.mxu0 %v288
    %356 = vmatprep.subr.bf16.mxu0 %v287
    %357 = vmatpush2.bf16.msra.mxu0 %v286
    %358 = vmatprep.subr.bf16.mxu0 %v285
    %359 = vmatpush2.bf16.msra.mxu0 %v284
    %360 = vmatprep.subr.bf16.mxu0 %v283
    %361 = vmatpush2.bf16.msra.mxu0 %v282
    %362 = vmatprep.mubr.bf16.mxu0 %v137
    %363 = vmatmul.mubr.bf16.gmra.mxu0 %v136
    %v364 = vpop.f32.mrf.mxu0
    %v365 = vadd.f32 0.0, %v364
    %v366 = vpop.f32.mrf.mxu0
    %v367 = vadd.f32 0.0, %v366
    %v368 = vpop.f32.mrf.mxu0
    %v369 = vadd.f32 0.0, %v368
    %v370 = vpop.f32.mrf.mxu0
    %v371 = vadd.f32 0.0, %v370
    %372 = vdwg.mxu0
    %v373 = vpack.c.bf16 %v371, %v367
    %v374 = vld [vmem:[#allocation7] sm:$0xf]
    %v375 = vld [vmem:[#allocation7 + $0x4] sm:$0xf]
    %v376 = vld [vmem:[#allocation7 + $0x8] sm:$0xf]
    %v377 = vld [vmem:[#allocation7 + $0xc] sm:$0xf]
    %v378 = vld [vmem:[#allocation7 + $0x10] sm:$0xf]
    %v379 = vld [vmem:[#allocation7 + $0x14] sm:$0xf]
    %v380 = vld [vmem:[#allocation7 + $0x18] sm:$0xf]
    %v381 = vld [vmem:[#allocation7 + $0x1c] sm:$0xf]
    %v382 = vld [vmem:[#allocation7 + $0x20] sm:$0xf]
    %v383 = vld [vmem:[#allocation7 + $0x24] sm:$0xf]
    %v384 = vld [vmem:[#allocation7 + $0x28] sm:$0xf]
    %v385 = vld [vmem:[#allocation7 + $0x2c] sm:$0xf]
    %v386 = vld [vmem:[#allocation7 + $0x30] sm:$0xf]
    %v387 = vld [vmem:[#allocation7 + $0x34] sm:$0xf]
    %v388 = vld [vmem:[#allocation7 + $0x38] sm:$0xf]
    %v389 = vld [vmem:[#allocation7 + $0x3c] sm:$0xf]
    %v406 = vunpack.c.l.b16 %v374
    %v407 = vunpack.c.l.b16 %v375
    %v408 = vunpack.c.l.b16 %v376
    %v409 = vunpack.c.l.b16 %v377
    %v410 = vunpack.c.l.b16 %v378
    %v411 = vunpack.c.l.b16 %v379
    %v412 = vunpack.c.l.b16 %v380
    %v413 = vunpack.c.l.b16 %v381
    %v414 = vunpack.c.l.b16 %v382
    %v415 = vunpack.c.l.b16 %v383
    %v416 = vunpack.c.l.b16 %v384
    %v417 = vunpack.c.l.b16 %v385
    %v418 = vunpack.c.l.b16 %v386
    %v419 = vunpack.c.l.b16 %v387
    %v420 = vunpack.c.l.b16 %v388
    %v421 = vunpack.c.l.b16 %v389
    %v422 = vpack.c.b16 %v407, %v406
    %v423 = vpack.c.b16 %v409, %v408
    %v424 = vpack.c.b16 %v411, %v410
    %v425 = vpack.c.b16 %v413, %v412
    %v426 = vpack.c.b16 %v415, %v414
    %v427 = vpack.c.b16 %v417, %v416
    %v428 = vpack.c.b16 %v419, %v418
    %v429 = vpack.c.b16 %v421, %v420
    %438 = vmatprep.subr.bf16.mxu0 0
    %439 = vmatpush1.bf16.msra.mxu0 %v429
    %440 = vmatprep.subr.bf16.mxu0 0
    %441 = vmatpush1.bf16.msra.mxu0 %v428
    %442 = vmatprep.subr.bf16.mxu0 0
    %443 = vmatpush1.bf16.msra.mxu0 %v427
    %444 = vmatprep.subr.bf16.mxu0 0
    %445 = vmatpush1.bf16.msra.mxu0 %v426
    %446 = vmatprep.subr.bf16.mxu0 0
    %447 = vmatpush1.bf16.msra.mxu0 %v425
    %448 = vmatprep.subr.bf16.mxu0 0
    %449 = vmatpush1.bf16.msra.mxu0 %v424
    %450 = vmatprep.subr.bf16.mxu0 0
    %451 = vmatpush1.bf16.msra.mxu0 %v423
    %452 = vmatprep.subr.bf16.mxu0 0
    %453 = vmatpush1.bf16.msra.mxu0 %v422
    %454 = vmatprep.subr.bf16.mxu0 0
    %455 = vmatpush2.bf16.msra.mxu0 0
    %456 = vmatprep.subr.bf16.mxu0 0
    %457 = vmatpush2.bf16.msra.mxu0 0
    %458 = vmatprep.subr.bf16.mxu0 0
    %459 = vmatpush2.bf16.msra.mxu0 0
    %460 = vmatprep.subr.bf16.mxu0 0
    %461 = vmatpush2.bf16.msra.mxu0 0
    %462 = vmatprep.subr.bf16.mxu0 0
    %463 = vmatpush2.bf16.msra.mxu0 0
    %464 = vmatprep.subr.bf16.mxu0 0
    %465 = vmatpush2.bf16.msra.mxu0 0
    %466 = vmatprep.subr.bf16.mxu0 0
    %467 = vmatpush2.bf16.msra.mxu0 0
    %468 = vmatprep.subr.bf16.mxu0 0
    %469 = vmatpush2.bf16.msra.mxu0 0
    %470 = vmatprep.mubr.bf16.mxu0 0
    %471 = vmatmul.mubr.bf16.gmra.mxu0 %v373
    %v472 = vpop.f32.mrf.mxu0
    %v473 = vadd.f32 0.0, %v472
    %v474 = vpop.f32.mrf.mxu0
    %v475 = vpop.f32.mrf.mxu0
    %v476 = vadd.f32 0.0, %v475
    %v477 = vpop.f32.mrf.mxu0
    %478 = vdwg.mxu0
    %v479 = vadd.f32 %v365, %v473
    %v480 = vadd.f32 %v369, %v476
    %v481 = vld [vmem:[%s2] sm:$0x1]
    %v483 = vlaneseq
    %v484 = vshrl.u32 %v483, 7
    %v485 = vsub.s32 0, %v484
    %v486 = vrot.slane %v481, %v485
    %v488 = vadd.f32 %v479, %v486
    %v489 = vadd.f32 %v480, %v486
    %vm490 = vcmp.ge.f32.partialorder %v488, 0.0
    %vm491 = vcmp.ge.f32.partialorder %v489, 0.0
    %v492 = vmul.f32 %v488, 0.01
    %v493 = vmul.f32 %v489, 0.01
    %v494 = vsel %vm490, %v488, %v492
    %v495 = vsel %vm491, %v489, %v493
    %v496 = vpack.c.bf16 %v495, %v494
    %v497 = vld [vmem:[#allocation8] sm:$0xff]
    %v498 = vld [vmem:[#allocation8 + $0x8] sm:$0xff]
    %v499 = vld [vmem:[#allocation8 + $0x10] sm:$0xff]
    %v500 = vld [vmem:[#allocation8 + $0x18] sm:$0xff]
    %v501 = vld [vmem:[#allocation8 + $0x20] sm:$0xff]
    %v502 = vld [vmem:[#allocation8 + $0x28] sm:$0xff]
    %v503 = vld [vmem:[#allocation8 + $0x30] sm:$0xff]
    %v504 = vld [vmem:[#allocation8 + $0x38] sm:$0xff]
    %v505 = vld [vmem:[#allocation8 + $0x40] sm:$0xff]
    %v506 = vld [vmem:[#allocation8 + $0x48] sm:$0xff]
    %v507 = vld [vmem:[#allocation8 + $0x50] sm:$0xff]
    %v508 = vld [vmem:[#allocation8 + $0x58] sm:$0xff]
    %v509 = vld [vmem:[#allocation8 + $0x60] sm:$0xff]
    %v510 = vld [vmem:[#allocation8 + $0x68] sm:$0xff]
    %v511 = vld [vmem:[#allocation8 + $0x70] sm:$0xff]
    %v512 = vld [vmem:[#allocation8 + $0x78] sm:$0xff]
    %v529 = vunpack.c.l.b16 %v497
    %v530 = vunpack.c.h.b16 %v497
    %v531 = vunpack.c.l.b16 %v498
    %v532 = vunpack.c.h.b16 %v498
    %v533 = vunpack.c.l.b16 %v499
    %v534 = vunpack.c.h.b16 %v499
    %v535 = vunpack.c.l.b16 %v500
    %v536 = vunpack.c.h.b16 %v500
    %v537 = vunpack.c.l.b16 %v501
    %v538 = vunpack.c.h.b16 %v501
    %v539 = vunpack.c.l.b16 %v502
    %v540 = vunpack.c.h.b16 %v502
    %v541 = vunpack.c.l.b16 %v503
    %v542 = vunpack.c.h.b16 %v503
    %v543 = vunpack.c.l.b16 %v504
    %v544 = vunpack.c.h.b16 %v504
    %v545 = vunpack.c.l.b16 %v505
    %v546 = vunpack.c.h.b16 %v505
    %v547 = vunpack.c.l.b16 %v506
    %v548 = vunpack.c.h.b16 %v506
    %v549 = vunpack.c.l.b16 %v507
    %v550 = vunpack.c.h.b16 %v507
    %v551 = vunpack.c.l.b16 %v508
    %v552 = vunpack.c.h.b16 %v508
    %v553 = vunpack.c.l.b16 %v509
    %v554 = vunpack.c.h.b16 %v509
    %v555 = vunpack.c.l.b16 %v510
    %v556 = vunpack.c.h.b16 %v510
    %v557 = vunpack.c.l.b16 %v511
    %v558 = vunpack.c.h.b16 %v511
    %v559 = vunpack.c.l.b16 %v512
    %v560 = vunpack.c.h.b16 %v512
    %v561 = vpack.c.b16 %v531, %v529
    %v562 = vpack.c.b16 %v532, %v530
    %v563 = vpack.c.b16 %v535, %v533
    %v564 = vpack.c.b16 %v536, %v534
    %v565 = vpack.c.b16 %v539, %v537
    %v566 = vpack.c.b16 %v540, %v538
    %v567 = vpack.c.b16 %v543, %v541
    %v568 = vpack.c.b16 %v544, %v542
    %v569 = vpack.c.b16 %v547, %v545
    %v570 = vpack.c.b16 %v548, %v546
    %v571 = vpack.c.b16 %v551, %v549
    %v572 = vpack.c.b16 %v552, %v550
    %v573 = vpack.c.b16 %v555, %v553
    %v574 = vpack.c.b16 %v556, %v554
    %v575 = vpack.c.b16 %v559, %v557
    %v576 = vpack.c.b16 %v560, %v558
    %593 = vmatprep.subr.bf16.mxu0 %v576
    %594 = vmatpush1.bf16.msra.mxu0 %v575
    %595 = vmatprep.subr.bf16.mxu0 %v574
    %596 = vmatpush1.bf16.msra.mxu0 %v573
    %597 = vmatprep.subr.bf16.mxu0 %v572
    %598 = vmatpush1.bf16.msra.mxu0 %v571
    %599 = vmatprep.subr.bf16.mxu0 %v570
    %600 = vmatpush1.bf16.msra.mxu0 %v569
    %601 = vmatprep.subr.bf16.mxu0 %v568
    %602 = vmatpush1.bf16.msra.mxu0 %v567
    %603 = vmatprep.subr.bf16.mxu0 %v566
    %604 = vmatpush1.bf16.msra.mxu0 %v565
    %605 = vmatprep.subr.bf16.mxu0 %v564
    %606 = vmatpush1.bf16.msra.mxu0 %v563
    %607 = vmatprep.subr.bf16.mxu0 %v562
    %608 = vmatpush1.bf16.msra.mxu0 %v561
    %609 = vmatprep.subr.bf16.mxu0 0
    %610 = vmatpush2.bf16.msra.mxu0 0
    %611 = vmatprep.subr.bf16.mxu0 0
    %612 = vmatpush2.bf16.msra.mxu0 0
    %613 = vmatprep.subr.bf16.mxu0 0
    %614 = vmatpush2.bf16.msra.mxu0 0
    %615 = vmatprep.subr.bf16.mxu0 0
    %616 = vmatpush2.bf16.msra.mxu0 0
    %617 = vmatprep.subr.bf16.mxu0 0
    %618 = vmatpush2.bf16.msra.mxu0 0
    %619 = vmatprep.subr.bf16.mxu0 0
    %620 = vmatpush2.bf16.msra.mxu0 0
    %621 = vmatprep.subr.bf16.mxu0 0
    %622 = vmatpush2.bf16.msra.mxu0 0
    %623 = vmatprep.subr.bf16.mxu0 0
    %624 = vmatpush2.bf16.msra.mxu0 0
    %625 = vmatprep.mubr.bf16.mxu0 0
    %626 = vmatmul.mubr.bf16.gmra.mxu0 %v496
    %v627 = vpop.f32.mrf.mxu0
    %v628 = vadd.f32 0.0, %v627
    %v629 = vpop.f32.mrf.mxu0
    %v630 = vadd.f32 0.0, %v629
    %v631 = vpop.f32.mrf.mxu0
    %v632 = vadd.f32 0.0, %v631
    %v633 = vpop.f32.mrf.mxu0
    %v634 = vadd.f32 0.0, %v633
    %635 = vdwg.mxu0
    %v636 = vpack.c.bf16 %v634, %v630
    %v637 = vld [vmem:[#allocation10] sm:$0xf]
    %v638 = vld [vmem:[#allocation10 + $0x4] sm:$0xf]
    %v639 = vld [vmem:[#allocation10 + $0x8] sm:$0xf]
    %v640 = vld [vmem:[#allocation10 + $0xc] sm:$0xf]
    %v641 = vld [vmem:[#allocation10 + $0x10] sm:$0xf]
    %v642 = vld [vmem:[#allocation10 + $0x14] sm:$0xf]
    %v643 = vld [vmem:[#allocation10 + $0x18] sm:$0xf]
    %v644 = vld [vmem:[#allocation10 + $0x1c] sm:$0xf]
    %v645 = vld [vmem:[#allocation10 + $0x20] sm:$0xf]
    %v646 = vld [vmem:[#allocation10 + $0x24] sm:$0xf]
    %v647 = vld [vmem:[#allocation10 + $0x28] sm:$0xf]
    %v648 = vld [vmem:[#allocation10 + $0x2c] sm:$0xf]
    %v649 = vld [vmem:[#allocation10 + $0x30] sm:$0xf]
    %v650 = vld [vmem:[#allocation10 + $0x34] sm:$0xf]
    %v651 = vld [vmem:[#allocation10 + $0x38] sm:$0xf]
    %v652 = vld [vmem:[#allocation10 + $0x3c] sm:$0xf]
    %v669 = vunpack.c.l.b16 %v637
    %v670 = vunpack.c.l.b16 %v638
    %v671 = vunpack.c.l.b16 %v639
    %v672 = vunpack.c.l.b16 %v640
    %v673 = vunpack.c.l.b16 %v641
    %v674 = vunpack.c.l.b16 %v642
    %v675 = vunpack.c.l.b16 %v643
    %v676 = vunpack.c.l.b16 %v644
    %v677 = vunpack.c.l.b16 %v645
    %v678 = vunpack.c.l.b16 %v646
    %v679 = vunpack.c.l.b16 %v647
    %v680 = vunpack.c.l.b16 %v648
    %v681 = vunpack.c.l.b16 %v649
    %v682 = vunpack.c.l.b16 %v650
    %v683 = vunpack.c.l.b16 %v651
    %v684 = vunpack.c.l.b16 %v652
    %v685 = vpack.c.b16 %v670, %v669
    %v686 = vpack.c.b16 %v672, %v671
    %v687 = vpack.c.b16 %v674, %v673
    %v688 = vpack.c.b16 %v676, %v675
    %v689 = vpack.c.b16 %v678, %v677
    %v690 = vpack.c.b16 %v680, %v679
    %v691 = vpack.c.b16 %v682, %v681
    %v692 = vpack.c.b16 %v684, %v683
    %701 = vmatprep.subr.bf16.mxu0 0
    %702 = vmatpush1.bf16.msra.mxu0 %v692
    %703 = vmatprep.subr.bf16.mxu0 0
    %704 = vmatpush1.bf16.msra.mxu0 %v691
    %705 = vmatprep.subr.bf16.mxu0 0
    %706 = vmatpush1.bf16.msra.mxu0 %v690
    %707 = vmatprep.subr.bf16.mxu0 0
    %708 = vmatpush1.bf16.msra.mxu0 %v689
    %709 = vmatprep.subr.bf16.mxu0 0
    %710 = vmatpush1.bf16.msra.mxu0 %v688
    %711 = vmatprep.subr.bf16.mxu0 0
    %712 = vmatpush1.bf16.msra.mxu0 %v687
    %713 = vmatprep.subr.bf16.mxu0 0
    %714 = vmatpush1.bf16.msra.mxu0 %v686
    %715 = vmatprep.subr.bf16.mxu0 0
    %716 = vmatpush1.bf16.msra.mxu0 %v685
    %717 = vmatprep.subr.bf16.mxu0 0
    %718 = vmatpush2.bf16.msra.mxu0 0
    %719 = vmatprep.subr.bf16.mxu0 0
    %720 = vmatpush2.bf16.msra.mxu0 0
    %721 = vmatprep.subr.bf16.mxu0 0
    %722 = vmatpush2.bf16.msra.mxu0 0
    %723 = vmatprep.subr.bf16.mxu0 0
    %724 = vmatpush2.bf16.msra.mxu0 0
    %725 = vmatprep.subr.bf16.mxu0 0
    %726 = vmatpush2.bf16.msra.mxu0 0
    %727 = vmatprep.subr.bf16.mxu0 0
    %728 = vmatpush2.bf16.msra.mxu0 0
    %729 = vmatprep.subr.bf16.mxu0 0
    %730 = vmatpush2.bf16.msra.mxu0 0
    %731 = vmatprep.subr.bf16.mxu0 0
    %732 = vmatpush2.bf16.msra.mxu0 0
    %733 = vmatprep.mubr.bf16.mxu0 0
    %734 = vmatmul.mubr.bf16.gmra.mxu0 %v636
    %v735 = vpop.f32.mrf.mxu0
    %v736 = vadd.f32 0.0, %v735
    %v737 = vpop.f32.mrf.mxu0
    %v738 = vpop.f32.mrf.mxu0
    %v739 = vadd.f32 0.0, %v738
    %v740 = vpop.f32.mrf.mxu0
    %741 = vdwg.mxu0
    %v742 = vadd.f32 %v628, %v736
    %v743 = vadd.f32 %v632, %v739
    %v744 = vld [vmem:[%s5] sm:$0x1]
    %v746 = vlaneseq
    %v747 = vshrl.u32 %v746, 7
    %v748 = vsub.s32 0, %v747
    %v749 = vrot.slane %v744, %v748
    %v751 = vadd.f32 %v742, %v749
    %v752 = vadd.f32 %v743, %v749
    %vm753 = vcmp.ge.f32.partialorder %v751, 0.0
    %vm754 = vcmp.ge.f32.partialorder %v752, 0.0
    %v755 = vmul.f32 %v751, 0.01
    %v756 = vmul.f32 %v752, 0.01
    %v757 = vsel %vm753, %v751, %v755
    %v758 = vsel %vm754, %v752, %v756
    %v759 = vpack.c.bf16 %v758, %v757
    %v760 = vld [vmem:[#allocation11] sm:$0xff]
    %v761 = vld [vmem:[#allocation11 + $0x8] sm:$0xff]
    %v762 = vld [vmem:[#allocation11 + $0x10] sm:$0xff]
    %v763 = vld [vmem:[#allocation11 + $0x18] sm:$0xff]
    %v764 = vld [vmem:[#allocation11 + $0x20] sm:$0xff]
    %v765 = vld [vmem:[#allocation11 + $0x28] sm:$0xff]
    %v766 = vld [vmem:[#allocation11 + $0x30] sm:$0xff]
    %v767 = vld [vmem:[#allocation11 + $0x38] sm:$0xff]
    %v768 = vld [vmem:[#allocation11 + $0x40] sm:$0xff]
    %v769 = vld [vmem:[#allocation11 + $0x48] sm:$0xff]
    %v770 = vld [vmem:[#allocation11 + $0x50] sm:$0xff]
    %v771 = vld [vmem:[#allocation11 + $0x58] sm:$0xff]
    %v772 = vld [vmem:[#allocation11 + $0x60] sm:$0xff]
    %v773 = vld [vmem:[#allocation11 + $0x68] sm:$0xff]
    %v774 = vld [vmem:[#allocation11 + $0x70] sm:$0xff]
    %v775 = vld [vmem:[#allocation11 + $0x78] sm:$0xff]
    %v792 = vunpack.c.l.b16 %v760
    %v793 = vunpack.c.h.b16 %v760
    %v794 = vunpack.c.l.b16 %v761
    %v795 = vunpack.c.h.b16 %v761
    %v796 = vunpack.c.l.b16 %v762
    %v797 = vunpack.c.h.b16 %v762
    %v798 = vunpack.c.l.b16 %v763
    %v799 = vunpack.c.h.b16 %v763
    %v800 = vunpack.c.l.b16 %v764
    %v801 = vunpack.c.h.b16 %v764
    %v802 = vunpack.c.l.b16 %v765
    %v803 = vunpack.c.h.b16 %v765
    %v804 = vunpack.c.l.b16 %v766
    %v805 = vunpack.c.h.b16 %v766
    %v806 = vunpack.c.l.b16 %v767
    %v807 = vunpack.c.h.b16 %v767
    %v808 = vunpack.c.l.b16 %v768
    %v809 = vunpack.c.h.b16 %v768
    %v810 = vunpack.c.l.b16 %v769
    %v811 = vunpack.c.h.b16 %v769
    %v812 = vunpack.c.l.b16 %v770
    %v813 = vunpack.c.h.b16 %v770
    %v814 = vunpack.c.l.b16 %v771
    %v815 = vunpack.c.h.b16 %v771
    %v816 = vunpack.c.l.b16 %v772
    %v817 = vunpack.c.h.b16 %v772
    %v818 = vunpack.c.l.b16 %v773
    %v819 = vunpack.c.h.b16 %v773
    %v820 = vunpack.c.l.b16 %v774
    %v821 = vunpack.c.h.b16 %v774
    %v822 = vunpack.c.l.b16 %v775
    %v823 = vunpack.c.h.b16 %v775
    %v824 = vpack.c.b16 %v794, %v792
    %v825 = vpack.c.b16 %v795, %v793
    %v826 = vpack.c.b16 %v798, %v796
    %v827 = vpack.c.b16 %v799, %v797
    %v828 = vpack.c.b16 %v802, %v800
    %v829 = vpack.c.b16 %v803, %v801
    %v830 = vpack.c.b16 %v806, %v804
    %v831 = vpack.c.b16 %v807, %v805
    %v832 = vpack.c.b16 %v810, %v808
    %v833 = vpack.c.b16 %v811, %v809
    %v834 = vpack.c.b16 %v814, %v812
    %v835 = vpack.c.b16 %v815, %v813
    %v836 = vpack.c.b16 %v818, %v816
    %v837 = vpack.c.b16 %v819, %v817
    %v838 = vpack.c.b16 %v822, %v820
    %v839 = vpack.c.b16 %v823, %v821
    %856 = vmatprep.subr.bf16.mxu0 %v839
    %857 = vmatpush1.bf16.msra.mxu0 %v838
    %858 = vmatprep.subr.bf16.mxu0 %v837
    %859 = vmatpush1.bf16.msra.mxu0 %v836
    %860 = vmatprep.subr.bf16.mxu0 %v835
    %861 = vmatpush1.bf16.msra.mxu0 %v834
    %862 = vmatprep.subr.bf16.mxu0 %v833
    %863 = vmatpush1.bf16.msra.mxu0 %v832
    %864 = vmatprep.subr.bf16.mxu0 %v831
    %865 = vmatpush1.bf16.msra.mxu0 %v830
    %866 = vmatprep.subr.bf16.mxu0 %v829
    %867 = vmatpush1.bf16.msra.mxu0 %v828
    %868 = vmatprep.subr.bf16.mxu0 %v827
    %869 = vmatpush1.bf16.msra.mxu0 %v826
    %870 = vmatprep.subr.bf16.mxu0 %v825
    %871 = vmatpush1.bf16.msra.mxu0 %v824
    %872 = vmatprep.subr.bf16.mxu0 0
    %873 = vmatpush2.bf16.msra.mxu0 0
    %874 = vmatprep.subr.bf16.mxu0 0
    %875 = vmatpush2.bf16.msra.mxu0 0
    %876 = vmatprep.subr.bf16.mxu0 0
    %877 = vmatpush2.bf16.msra.mxu0 0
    %878 = vmatprep.subr.bf16.mxu0 0
    %879 = vmatpush2.bf16.msra.mxu0 0
    %880 = vmatprep.subr.bf16.mxu0 0
    %881 = vmatpush2.bf16.msra.mxu0 0
    %882 = vmatprep.subr.bf16.mxu0 0
    %883 = vmatpush2.bf16.msra.mxu0 0
    %884 = vmatprep.subr.bf16.mxu0 0
    %885 = vmatpush2.bf16.msra.mxu0 0
    %886 = vmatprep.subr.bf16.mxu0 0
    %887 = vmatpush2.bf16.msra.mxu0 0
    %888 = vmatprep.mubr.bf16.mxu0 0
    %889 = vmatmul.mubr.bf16.gmra.mxu0 %v759
    %v890 = vpop.f32.mrf.mxu0
    %v891 = vadd.f32 0.0, %v890
    %v892 = vpop.f32.mrf.mxu0
    %v893 = vadd.f32 0.0, %v892
    %v894 = vpop.f32.mrf.mxu0
    %v895 = vadd.f32 0.0, %v894
    %v896 = vpop.f32.mrf.mxu0
    %v897 = vadd.f32 0.0, %v896
    %898 = vdwg.mxu0
    %v899 = vpack.c.bf16 %v897, %v893
    %v900 = vld [vmem:[#allocation13] sm:$0xf]
    %v901 = vld [vmem:[#allocation13 + $0x4] sm:$0xf]
    %v902 = vld [vmem:[#allocation13 + $0x8] sm:$0xf]
    %v903 = vld [vmem:[#allocation13 + $0xc] sm:$0xf]
    %v904 = vld [vmem:[#allocation13 + $0x10] sm:$0xf]
    %v905 = vld [vmem:[#allocation13 + $0x14] sm:$0xf]
    %v906 = vld [vmem:[#allocation13 + $0x18] sm:$0xf]
    %v907 = vld [vmem:[#allocation13 + $0x1c] sm:$0xf]
    %v908 = vld [vmem:[#allocation13 + $0x20] sm:$0xf]
    %v909 = vld [vmem:[#allocation13 + $0x24] sm:$0xf]
    %v910 = vld [vmem:[#allocation13 + $0x28] sm:$0xf]
    %v911 = vld [vmem:[#allocation13 + $0x2c] sm:$0xf]
    %v912 = vld [vmem:[#allocation13 + $0x30] sm:$0xf]
    %v913 = vld [vmem:[#allocation13 + $0x34] sm:$0xf]
    %v914 = vld [vmem:[#allocation13 + $0x38] sm:$0xf]
    %v915 = vld [vmem:[#allocation13 + $0x3c] sm:$0xf]
    %v932 = vunpack.c.l.b16 %v900
    %v933 = vunpack.c.l.b16 %v901
    %v934 = vunpack.c.l.b16 %v902
    %v935 = vunpack.c.l.b16 %v903
    %v936 = vunpack.c.l.b16 %v904
    %v937 = vunpack.c.l.b16 %v905
    %v938 = vunpack.c.l.b16 %v906
    %v939 = vunpack.c.l.b16 %v907
    %v940 = vunpack.c.l.b16 %v908
    %v941 = vunpack.c.l.b16 %v909
    %v942 = vunpack.c.l.b16 %v910
    %v943 = vunpack.c.l.b16 %v911
    %v944 = vunpack.c.l.b16 %v912
    %v945 = vunpack.c.l.b16 %v913
    %v946 = vunpack.c.l.b16 %v914
    %v947 = vunpack.c.l.b16 %v915
    %v948 = vpack.c.b16 %v933, %v932
    %v949 = vpack.c.b16 %v935, %v934
    %v950 = vpack.c.b16 %v937, %v936
    %v951 = vpack.c.b16 %v939, %v938
    %v952 = vpack.c.b16 %v941, %v940
    %v953 = vpack.c.b16 %v943, %v942
    %v954 = vpack.c.b16 %v945, %v944
    %v955 = vpack.c.b16 %v947, %v946
    %964 = vmatprep.subr.bf16.mxu0 0
    %965 = vmatpush1.bf16.msra.mxu0 %v955
    %966 = vmatprep.subr.bf16.mxu0 0
    %967 = vmatpush1.bf16.msra.mxu0 %v954
    %968 = vmatprep.subr.bf16.mxu0 0
    %969 = vmatpush1.bf16.msra.mxu0 %v953
    %970 = vmatprep.subr.bf16.mxu0 0
    %971 = vmatpush1.bf16.msra.mxu0 %v952
    %972 = vmatprep.subr.bf16.mxu0 0
    %973 = vmatpush1.bf16.msra.mxu0 %v951
    %974 = vmatprep.subr.bf16.mxu0 0
    %975 = vmatpush1.bf16.msra.mxu0 %v950
    %976 = vmatprep.subr.bf16.mxu0 0
    %977 = vmatpush1.bf16.msra.mxu0 %v949
    %978 = vmatprep.subr.bf16.mxu0 0
    %979 = vmatpush1.bf16.msra.mxu0 %v948
    %980 = vmatprep.subr.bf16.mxu0 0
    %981 = vmatpush2.bf16.msra.mxu0 0
    %982 = vmatprep.subr.bf16.mxu0 0
    %983 = vmatpush2.bf16.msra.mxu0 0
    %984 = vmatprep.subr.bf16.mxu0 0
    %985 = vmatpush2.bf16.msra.mxu0 0
    %986 = vmatprep.subr.bf16.mxu0 0
    %987 = vmatpush2.bf16.msra.mxu0 0
    %988 = vmatprep.subr.bf16.mxu0 0
    %989 = vmatpush2.bf16.msra.mxu0 0
    %990 = vmatprep.subr.bf16.mxu0 0
    %991 = vmatpush2.bf16.msra.mxu0 0
    %992 = vmatprep.subr.bf16.mxu0 0
    %993 = vmatpush2.bf16.msra.mxu0 0
    %994 = vmatprep.subr.bf16.mxu0 0
    %995 = vmatpush2.bf16.msra.mxu0 0
    %996 = vmatprep.mubr.bf16.mxu0 0
    %997 = vmatmul.mubr.bf16.gmra.mxu0 %v899
    %v998 = vpop.f32.mrf.mxu0
    %v999 = vadd.f32 0.0, %v998
    %v1000 = vpop.f32.mrf.mxu0
    %v1001 = vpop.f32.mrf.mxu0
    %v1002 = vadd.f32 0.0, %v1001
    %v1003 = vpop.f32.mrf.mxu0
    %1004 = vdwg.mxu0
    %v1005 = vadd.f32 %v891, %v999
    %v1006 = vadd.f32 %v895, %v1002
    %v1007 = vld [vmem:[%s8] sm:$0x1]
    %v1009 = vlaneseq
    %v1010 = vshrl.u32 %v1009, 7
    %v1011 = vsub.s32 0, %v1010
    %v1012 = vrot.slane %v1007, %v1011
    %v1014 = vadd.f32 %v1005, %v1012
    %v1015 = vadd.f32 %v1006, %v1012
    %1016 = vst [vmem:[#allocation14] sm:$0xff] %v1014
    %1017 = vst [vmem:[#allocation14 + $0x8] sm:$0xff] %v1015
    // Predicated region
    $region70: #{tpu_custom_call.1} parent=1 // pred_check
      _
    $region71: #{tpu_custom_call.1} parent=1 // pred_check_branch
      %1019 = sbr.rel (0) target = $region73
    $region72: #{tpu_custom_call.1} parent=1 // pred_region
      %s1021 = ssub.s32 256, 256
      %1022 = vsyncadd [#allocation4], %s1021
      %s1023 = sshll.u32 [#allocation14], 4
      %s1024 = int_to_ptr.vmem [resolvable:$true] %s1023
      %1029 = dma.vmem_to_hbm [thread:$0]  %s1024, 256, %s10, [#allocation4], 128, 128, 8
    $region73: #{tpu_custom_call.1} parent=1 // pred_fallthru
      _
    // Predicated region
    $region74: #{tpu_custom_call.1} parent=1 // pred_check
      _
    $region75: #{tpu_custom_call.1} parent=1 // pred_check_branch
      %1031 = sbr.rel (0) target = $region77
    $region76: #{tpu_custom_call.1} parent=1 // pred_region
      %1032 = dma.done [#allocation4], 256
    $region77: #{tpu_custom_call.1} parent=1 // pred_fallthru
      _
    %1033 = vsyncpa [#allocation3], 1
    %1034 = vsyncpa [#allocation6], 1
    %1035 = vsyncpa [#allocation9], 1
    %1036 = vsyncpa [#allocation12], 1
    %1037 = vsyncpa [#allocation4], 1

</llo_original>
